<compile_context>
chip_gen: v7x
topology: tpu7x:2x2x1
jax: 0.10.0
libtpu: 0.0.40
codegen_flags: <defaults>
</compile_context>

<pallas_src>
import jax
import jax.numpy as jnp
from jax.experimental import pallas as pl
from jax.experimental.pallas import tpu as pltpu


def _round_up(x: int, m: int) -> int:
    return (x + m - 1) // m * m


def _sublane_multiple(dtype) -> int:
    # f32 -> 8, bf16 -> 16, int8/fp8 -> 32 (sub-32-bit dtypes pack along sublanes).
    return {4: 8, 2: 16, 1: 32}.get(jnp.dtype(dtype).itemsize, 8)


def _vmem_budget_bytes() -> int:
    """Per-generation VMEM budget with headroom for compiler scratch / pipeline."""
    cap = None
    try:
        cap = getattr(pltpu.get_tpu_info(), "vmem_capacity_bytes", None)
    except Exception:
        cap = None
    if not cap:
        cap = 64 * 1024 * 1024          # conservative fallback (safe even on v7x)
    # ~50 MiB on v7x (64 MiB physical), ~100 MiB on v5e/v6e (128 MiB physical).
    return min(int(cap * 0.78), cap - 8 * 1024 * 1024)


def _choose_tiles(B, IN, OUT_P, itemsize, sub, budget):
    """Pick (tile_b, tile_n, tile_k) that fit the VMEM budget, preferring large
    batch tiles (step-count amortization) over wide N slabs over K tiling."""

    def fits(tb, tn, tk):
        return (2 * itemsize * (tb * tk + tk * tn + tn)   # x, w, c (double-buffered)
                + 2 * itemsize * tb * tn                  # out (double-buffered)
                + 4 * tb * tn) <= budget                  # f32 accumulator scratch

    tile_b = max(sub, min(1024, _round_up(B, sub)))
    tile_n = OUT_P
    tile_k = IN
    # 1) shrink the N slab first (keeps the batch tile large).
    while not fits(tile_b, tile_n, tile_k) and tile_n > 128:
        tile_n = max(128, _round_up(tile_n // 2, 128))
    # Prefer 256-aligned N tiles for the 256-wide MXUs once we are multi-tile.
    if 256 < tile_n < OUT_P:
        tile_n = (tile_n // 256) * 256
    # 2) shrink the batch tile, but keep >= 512 when possible.
    while not fits(tile_b, tile_n, tile_k) and tile_b > 512:
        tile_b = max(512, _round_up(tile_b // 2, sub))
    # 3) tile the contraction (IN) axis rather than sacrificing tile_b further.
    while not fits(tile_b, tile_n, tile_k) and tile_k > 128:
        tile_k = max(128, _round_up(tile_k // 2, 128))
    # 4) last resort: shrink the batch tile below 512.
    while not fits(tile_b, tile_n, tile_k) and tile_b > sub:
        tile_b = max(sub, _round_up(tile_b // 2, sub))
    return tile_b, tile_n, tile_k


def _relu_layer_kernel(x_ref, w_ref, c_ref, o_ref, acc_ref):
    """acc = x @ w (f32, accumulated over the K grid axis); out = relu(acc - c)."""
    k = pl.program_id(2)

    @pl.when(k == 0)
    def _():
        acc_ref[...] = jnp.zeros_like(acc_ref)

    acc_ref[...] += jnp.dot(x_ref[...], w_ref[...],
                            preferred_element_type=jnp.float32)

    @pl.when(k == pl.num_programs(2) - 1)
    def _():
        o_ref[...] = jnp.maximum(acc_ref[...] - c_ref[...], 0.0).astype(o_ref.dtype)


def prepare_relu_layer_params(bias, weight):
    """One-time (per parameter set) preprocessing, hoisted out of the forward path:
    pads the weight to a lane-dense multiple-of-128 output width and folds the bias
    into the matmul: relu((x - b) @ W) == relu(x @ W - b @ W).
    Returns (w_padded, c_padded, out_features)."""
    in_features, out_features = weight.shape
    assert bias.shape == (in_features,)
    out_p = _round_up(out_features, 128)
    c = jnp.matmul(bias.astype(jnp.float32)[None, :], weight.astype(jnp.float32),
                   precision=jax.lax.Precision.HIGHEST)            # (1, OUT)
    if out_p != out_features:
        weight = jnp.pad(weight, ((0, 0), (0, out_p - out_features)))
        c = jnp.pad(c, ((0, 0), (0, out_p - out_features)))
    return weight, c, out_features


def relu_layer_apply(x, w_padded, c_padded, out_features, *,
                     tile_b=None, tile_n=None, tile_k=None):
    B, IN = x.shape
    IN_w, OUT_P = w_padded.shape
    assert IN == IN_w and c_padded.shape == (1, OUT_P) and OUT_P % 128 == 0

    dtype = x.dtype
    itemsize = jnp.dtype(dtype).itemsize
    sub = _sublane_multiple(dtype)
    budget = _vmem_budget_bytes()

    a_tb, a_tn, a_tk = _choose_tiles(B, IN, OUT_P, itemsize, sub, budget)
    tile_b = a_tb if tile_b is None else max(sub, _round_up(tile_b, sub))
    tile_n = a_tn if tile_n is None else max(128, _round_up(min(tile_n, OUT_P), 128))
    tile_k = a_tk if tile_k is None else tile_k
    if tile_k != IN:
        assert tile_k % 128 == 0, "tile_k must be a multiple of 128 when tiling K"

    # Rare large-IN fallback: pad the contraction axis to a multiple of tile_k
    # (zero columns/rows contribute nothing to the dot).
    if tile_k != IN:
        in_p = _round_up(IN, tile_k)
        if in_p != IN:
            x = jnp.pad(x, ((0, 0), (0, in_p - IN)))
            w_padded = jnp.pad(w_padded, ((0, in_p - IN), (0, 0)))
    else:
        in_p = IN

    gb = pl.cdiv(B, tile_b)        # ragged final batch block -> masked by Pallas
    gn = pl.cdiv(OUT_P, tile_n)
    gk = in_p // tile_k

    # Grid order: keep the larger operand resident. With the batch axis fastest the
    # weight slab streams from HBM only once; with the N axis fastest the x tile
    # streams only once. Pick whichever minimizes total HBM traffic.
    w_bytes = in_p * OUT_P
    x_bytes = gb * tile_b * in_p
    n_outer = gn > 1 and (w_bytes + gn * x_bytes) < (gb * w_bytes + x_bytes)

    if n_outer:
        grid = (gn, gb, gk)
        x_map = lambda j, i, k: (i, k)
        w_map = lambda j, i, k: (k, j)
        c_map = lambda j, i, k: (0, j)
        o_map = lambda j, i, k: (i, j)
    else:
        grid = (gb, gn, gk)
        x_map = lambda i, j, k: (i, k)
        w_map = lambda i, j, k: (k, j)
        c_map = lambda i, j, k: (0, j)
        o_map = lambda i, j, k: (i, j)

    out = pl.pallas_call(
        _relu_layer_kernel,
        out_shape=jax.ShapeDtypeStruct((B, OUT_P), dtype),
        grid_spec=pltpu.PrefetchScalarGridSpec(
            num_scalar_prefetch=0,
            grid=grid,
            in_specs=[
                pl.BlockSpec((tile_b, tile_k), x_map),     # x batch tile
                pl.BlockSpec((tile_k, tile_n), w_map),     # weight slab
                pl.BlockSpec((1, tile_n), c_map),          # folded bias row (f32)
            ],
            out_specs=pl.BlockSpec((tile_b, tile_n), o_map),
            scratch_shapes=[pltpu.VMEM((tile_b, tile_n), jnp.float32)],
        ),
        compiler_params=pltpu.CompilerParams(
            dimension_semantics=("parallel", "parallel", "arbitrary"),
            vmem_limit_bytes=budget,
        ),
    )(x, w_padded, c_padded)

    return out if OUT_P == out_features else out[:, :out_features]


def relu_layer(x, bias, weight, **tile_kwargs):
    """Convenience wrapper. For repeated calls, run prepare_relu_layer_params once
    and call relu_layer_apply directly (hoists weight padding / bias folding)."""
    w_p, c_p, out_features = prepare_relu_layer_params(bias, weight)
    return relu_layer_apply(x, w_p, c_p, out_features, **tile_kwargs)


def init_params(key, in_features, out_features):
    """Deterministic synthetic init mirroring the PyTorch module's __init__."""
    kw, kb = jax.random.split(key)
    # xavier_uniform_ on weight of shape (in_features, out_features)
    limit = jnp.sqrt(6.0 / (in_features + out_features))
    weight = jax.random.uniform(
        kw, (in_features, out_features), jnp.float32, -limit, limit)
    # truncated_normal_(bias, std=0.5): std-0.5 normal truncated to (-2, 2)
    bias = 0.5 * jax.random.truncated_normal(kb, -2.0, 2.0, (in_features,), jnp.float32)
    return weight, bias


if __name__ == "__main__":
    key = jax.random.PRNGKey(0)
    k_x, k_p, k_x2, k_p2 = jax.random.split(key, 4)

    # --- case 1: NAM-like shape, default tiling ---------------------------------
    batch, in_features, out_features = 600, 16, 32
    x = jax.random.normal(k_x, (batch, in_features), jnp.float32)
    weight, bias = init_params(k_p, in_features, out_features)
    w_p, c_p, out_f = prepare_relu_layer_params(bias, weight)

    ref = jnp.maximum(
        jnp.matmul(x - bias, weight, precision=jax.lax.Precision.HIGHEST), 0.0)

    out = jax.block_until_ready(relu_layer_apply(x, w_p, c_p, out_f))
    assert out.shape == (batch, out_features)
    assert jnp.allclose(out, ref, atol=1e-4, rtol=1e-4)

    # --- case 2: multi-step batch grid with a ragged final block (no padding) ---
    out2 = jax.block_until_ready(relu_layer_apply(x, w_p, c_p, out_f, tile_b=256))
    assert jnp.allclose(out2, ref, atol=1e-4, rtol=1e-4)

    # --- case 3: multi-N grid (weight-resident order) + K-tiled accumulation ----
    b3, in3, out3 = 64, 256, 512
    x3 = jax.random.normal(k_x2, (b3, in3), jnp.float32)
    w3, bias3 = init_params(k_p2, in3, out3)
    w3_p, c3_p, out3_f = prepare_relu_layer_params(bias3, w3)
    ref3 = jnp.maximum(
        jnp.matmul(x3 - bias3, w3, precision=jax.lax.Precision.HIGHEST), 0.0)
    out3_ = jax.block_until_ready(
        relu_layer_apply(x3, w3_p, c3_p, out3_f, tile_b=32, tile_n=128, tile_k=128))
    assert out3_.shape == (b3, out3)
    assert jnp.allclose(out3_, ref3, atol=1e-4, rtol=1e-4)

    print("KERNEL_OK")
</pallas_src>

<mosaic_0001>
module attributes {stable_mosaic.version = 11 : i64} {
  func.func @_relu_layer_kernel(%arg0: i32, %arg1: i32, %arg2: i32, %arg3: memref<600x16xf32, #tpu.memory_space<vmem>>, %arg4: memref<16x128xf32, #tpu.memory_space<vmem>>, %arg5: memref<1x128xf32, #tpu.memory_space<vmem>>, %arg6: memref<600x128xf32, #tpu.memory_space<vmem>>, %arg7: memref<600x128xf32, #tpu.memory_space<vmem>>) attributes {dimension_semantics = [#tpu.dimension_semantics<parallel>, #tpu.dimension_semantics<parallel>, #tpu.dimension_semantics<arbitrary>], iteration_bounds = array<i64: 1, 1, 1>, scalar_prefetch = 0 : i64, scratch_operands = 1 : i64, tpu.core_type = #tpu.core_type<tc>, window_params = [{transform_indices = @transform_0, window_bounds = array<i64: 600, 16>}, {transform_indices = @transform_1, window_bounds = array<i64: 16, 128>}, {transform_indices = @transform_2, window_bounds = array<i64: 1, 128>}, {transform_indices = @transform_3, window_bounds = array<i64: 600, 128>}]} {
    %c0_i32 = arith.constant 0 : i32
    %0 = arith.cmpi eq, %arg2, %c0_i32 : i32
    %1 = arith.extui %0 : i1 to i32
    %c0_i32_0 = arith.constant 0 : i32
    %2 = arith.cmpi ne, %1, %c0_i32_0 : i32
    scf.if %2 {
      %cst_10 = arith.constant 0.000000e+00 : f32
      %12 = vector.broadcast %cst_10 : f32 to vector<600x128xf32>
      %c0_11 = arith.constant 0 : index
      %c0_12 = arith.constant 0 : index
      %13 = vector.load %arg7[%c0_11, %c0_12] : memref<600x128xf32, #tpu.memory_space<vmem>>, vector<600x128xf32>
      tpu.vector_store %arg7[%c0_11, %c0_12], %12 {strides = array<i32>} : memref<600x128xf32, #tpu.memory_space<vmem>>, vector<600x128xf32>,
    } else {
    }
    %c0 = arith.constant 0 : index
    %c0_1 = arith.constant 0 : index
    %3 = vector.load %arg7[%c0, %c0_1] : memref<600x128xf32, #tpu.memory_space<vmem>>, vector<600x128xf32>
    %c0_2 = arith.constant 0 : index
    %c0_3 = arith.constant 0 : index
    %4 = vector.load %arg3[%c0_2, %c0_3] : memref<600x16xf32, #tpu.memory_space<vmem>>, vector<600x16xf32>
    %c0_4 = arith.constant 0 : index
    %c0_5 = arith.constant 0 : index
    %5 = vector.load %arg4[%c0_4, %c0_5] : memref<16x128xf32, #tpu.memory_space<vmem>>, vector<16x128xf32>
    %cst = arith.constant dense<0.000000e+00> : vector<600x128xf32>
    %6 = tpu.matmul %4, %5, %cst {dimension_numbers = #tpu.dot_dimension_numbers<[1], [0], [0], [1], [0, 0, 1, 1], [], []>} : vector<600x16xf32>, vector<16x128xf32>, vector<600x128xf32> -> vector<600x128xf32>
    %7 = arith.addf %3, %6 : vector<600x128xf32>
    %c0_6 = arith.constant 0 : index
    %c0_7 = arith.constant 0 : index
    %8 = vector.load %arg7[%c0_6, %c0_7] : memref<600x128xf32, #tpu.memory_space<vmem>>, vector<600x128xf32>
    tpu.vector_store %arg7[%c0_6, %c0_7], %7 {strides = array<i32>} : memref<600x128xf32, #tpu.memory_space<vmem>>, vector<600x128xf32>,
    %c0_i32_8 = arith.constant 0 : i32
    %9 = arith.cmpi eq, %arg2, %c0_i32_8 : i32
    %10 = arith.extui %9 : i1 to i32
    %c0_i32_9 = arith.constant 0 : i32
    %11 = arith.cmpi ne, %10, %c0_i32_9 : i32
    scf.if %11 {
      %c0_10 = arith.constant 0 : index
      %c0_11 = arith.constant 0 : index
      %12 = vector.load %arg7[%c0_10, %c0_11] : memref<600x128xf32, #tpu.memory_space<vmem>>, vector<600x128xf32>
      %c0_12 = arith.constant 0 : index
      %c0_13 = arith.constant 0 : index
      %13 = vector.load %arg5[%c0_12, %c0_13] : memref<1x128xf32, #tpu.memory_space<vmem>>, vector<1x128xf32>
      %14 = vector.broadcast %13 : vector<1x128xf32> to vector<600x128xf32>
      %15 = arith.subf %12, %14 : vector<600x128xf32>
      %cst_14 = arith.constant 0.000000e+00 : f32
      %16 = vector.broadcast %cst_14 : f32 to vector<600x128xf32>
      %17 = arith.maximumf %15, %16 : vector<600x128xf32>
      %c0_15 = arith.constant 0 : index
      %c0_16 = arith.constant 0 : index
      %18 = vector.load %arg6[%c0_15, %c0_16] : memref<600x128xf32, #tpu.memory_space<vmem>>, vector<600x128xf32>
      tpu.vector_store %arg6[%c0_15, %c0_16], %17 {strides = array<i32>} : memref<600x128xf32, #tpu.memory_space<vmem>>, vector<600x128xf32>,
    } else {
    }
    return
  }
  func.func @transform_0(%arg0: i32, %arg1: i32, %arg2: i32) -> (i32, i32) {
    %c0_i32 = arith.constant 0 : i32
    return %arg0, %arg2 : i32, i32
  }
  func.func @transform_1(%arg0: i32, %arg1: i32, %arg2: i32) -> (i32, i32) {
    %c0_i32 = arith.constant 0 : i32
    return %arg2, %arg1 : i32, i32
  }
  func.func @transform_2(%arg0: i32, %arg1: i32, %arg2: i32) -> (i32, i32) {
    %c0_i32 = arith.constant 0 : i32
    %c0_i32_0 = arith.constant 0 : i32
    return %c0_i32, %arg1 : i32, i32
  }
  func.func @transform_3(%arg0: i32, %arg1: i32, %arg2: i32) -> (i32, i32) {
    %c0_i32 = arith.constant 0 : i32
    return %arg0, %arg1 : i32, i32
  }
}

</mosaic_0001>

<llo_original>
// kernel: tpu_custom_call.1
$region0: #{tpu_custom_call.1}
  #allocation0 [shape = 'u32[]', space=smem, size = 0x4, offset = 0x4, fixed_abs, tag = 'smem constant byte address 0x4 - core index']
  #allocation1 [shape = 'u32[144,128]{1,0:T(1,128)}', space=vmem, size = 0x12000, scoped, tag = 'internal scratch']
  #allocation2 [shape = 'f32[600,128]{1,0:T(8,128)}', space=vmem, size = 0x4b000, scoped, tag = 'scratch operand']
  %s0 = inlined_call_operand.vmem [shape: f32[600,16], index: 0, kind: input, shape index: {}]
  %s1 = inlined_call_operand.vmem [shape: f32[16,128], index: 1, kind: input, shape index: {}]
  %s2 = inlined_call_operand.vmem [shape: f32[1,128], index: 2, kind: input, shape index: {}]
  %s3 = inlined_call_operand.hbm [shape: f32[600,128], index: 3, kind: output, shape index: {}]
  %s4 = sld [smem:[#allocation0]]
  $region30: #{tpu_custom_call.1} parent=0
    _
  %s6 = ssub.s32 1, %s4
  %s7 = scalar_select 0, %s6, %s4
  $region1: #{tpu_custom_call.1} parent=0
    #allocation3 [shape = 'u8[307200]{0}', space=vmem, size = 0x4b000, scoped, tag = 'output window, operand 0, single buffered']
    #allocation4 [shape = 's32[1]{0}', space=sflag, size = 0x4, scoped, tag = 'scoped memory for tpu_custom_call.1']
    %8 = vsyncpa [#allocation4], 0
    // Predicated region
    $region2: #{tpu_custom_call.1} parent=1 // pred_check
      _
    $region3: #{tpu_custom_call.1} parent=1 // pred_check_branch
      %10 = sbr.rel (0) target = $region5
    $region4: #{tpu_custom_call.1} parent=1 // pred_region
      _
    $region5: #{tpu_custom_call.1} parent=1 // pred_fallthru
      _
    // Predicated region
    $region6: #{tpu_custom_call.1} parent=1 // pred_check
      _
    $region7: #{tpu_custom_call.1} parent=1 // pred_check_branch
      %12 = sbr.rel (0) target = $region9
    $region8: #{tpu_custom_call.1} parent=1 // pred_region
      _
    $region9: #{tpu_custom_call.1} parent=1 // pred_fallthru
      _
    // Predicated region
    $region10: #{tpu_custom_call.1} parent=1 // pred_check
      _
    $region11: #{tpu_custom_call.1} parent=1 // pred_check_branch
      %14 = sbr.rel (0) target = $region13
    $region12: #{tpu_custom_call.1} parent=1 // pred_region
      _
    $region13: #{tpu_custom_call.1} parent=1 // pred_fallthru
      _
    %p15 = scmp.eq.s32.totalorder 0, 0
    // Predicated region
    $region14: #{tpu_custom_call.1} parent=1 // pred_check
      %p16 = pneg %p15
    $region15: #{tpu_custom_call.1} parent=1 // pred_check_branch
      %18 = sbr.rel (%p16) target = $region17
    $region16: #{tpu_custom_call.1} parent=1 // pred_region
      %19 = vst [vmem:[#allocation2] sm:$0xff] 0.0
      %20 = vst [vmem:[#allocation2 + $0x8] sm:$0xff] 0.0
      %21 = vst [vmem:[#allocation2 + $0x10] sm:$0xff] 0.0
      %22 = vst [vmem:[#allocation2 + $0x18] sm:$0xff] 0.0
      %23 = vst [vmem:[#allocation2 + $0x20] sm:$0xff] 0.0
      %24 = vst [vmem:[#allocation2 + $0x28] sm:$0xff] 0.0
      %25 = vst [vmem:[#allocation2 + $0x30] sm:$0xff] 0.0
      %26 = vst [vmem:[#allocation2 + $0x38] sm:$0xff] 0.0
      %27 = vst [vmem:[#allocation2 + $0x40] sm:$0xff] 0.0
      %28 = vst [vmem:[#allocation2 + $0x48] sm:$0xff] 0.0
      %29 = vst [vmem:[#allocation2 + $0x50] sm:$0xff] 0.0
      %30 = vst [vmem:[#allocation2 + $0x58] sm:$0xff] 0.0
      %31 = vst [vmem:[#allocation2 + $0x60] sm:$0xff] 0.0
      %32 = vst [vmem:[#allocation2 + $0x68] sm:$0xff] 0.0
      %33 = vst [vmem:[#allocation2 + $0x70] sm:$0xff] 0.0
      %34 = vst [vmem:[#allocation2 + $0x78] sm:$0xff] 0.0
      %35 = vst [vmem:[#allocation2 + $0x80] sm:$0xff] 0.0
      %36 = vst [vmem:[#allocation2 + $0x88] sm:$0xff] 0.0
      %37 = vst [vmem:[#allocation2 + $0x90] sm:$0xff] 0.0
      %38 = vst [vmem:[#allocation2 + $0x98] sm:$0xff] 0.0
      %39 = vst [vmem:[#allocation2 + $0xa0] sm:$0xff] 0.0
      %40 = vst [vmem:[#allocation2 + $0xa8] sm:$0xff] 0.0
      %41 = vst [vmem:[#allocation2 + $0xb0] sm:$0xff] 0.0
      %42 = vst [vmem:[#allocation2 + $0xb8] sm:$0xff] 0.0
      %43 = vst [vmem:[#allocation2 + $0xc0] sm:$0xff] 0.0
      %44 = vst [vmem:[#allocation2 + $0xc8] sm:$0xff] 0.0
      %45 = vst [vmem:[#allocation2 + $0xd0] sm:$0xff] 0.0
      %46 = vst [vmem:[#allocation2 + $0xd8] sm:$0xff] 0.0
      %47 = vst [vmem:[#allocation2 + $0xe0] sm:$0xff] 0.0
      %48 = vst [vmem:[#allocation2 + $0xe8] sm:$0xff] 0.0
      %49 = vst [vmem:[#allocation2 + $0xf0] sm:$0xff] 0.0
      %50 = vst [vmem:[#allocation2 + $0xf8] sm:$0xff] 0.0
      %51 = vst [vmem:[#allocation2 + $0x100] sm:$0xff] 0.0
      %52 = vst [vmem:[#allocation2 + $0x108] sm:$0xff] 0.0
      %53 = vst [vmem:[#allocation2 + $0x110] sm:$0xff] 0.0
      %54 = vst [vmem:[#allocation2 + $0x118] sm:$0xff] 0.0
      %55 = vst [vmem:[#allocation2 + $0x120] sm:$0xff] 0.0
      %56 = vst [vmem:[#allocation2 + $0x128] sm:$0xff] 0.0
      %57 = vst [vmem:[#allocation2 + $0x130] sm:$0xff] 0.0
      %58 = vst [vmem:[#allocation2 + $0x138] sm:$0xff] 0.0
      %59 = vst [vmem:[#allocation2 + $0x140] sm:$0xff] 0.0
      %60 = vst [vmem:[#allocation2 + $0x148] sm:$0xff] 0.0
      %61 = vst [vmem:[#allocation2 + $0x150] sm:$0xff] 0.0
      %62 = vst [vmem:[#allocation2 + $0x158] sm:$0xff] 0.0
      %63 = vst [vmem:[#allocation2 + $0x160] sm:$0xff] 0.0
      %64 = vst [vmem:[#allocation2 + $0x168] sm:$0xff] 0.0
      %65 = vst [vmem:[#allocation2 + $0x170] sm:$0xff] 0.0
      %66 = vst [vmem:[#allocation2 + $0x178] sm:$0xff] 0.0
      %67 = vst [vmem:[#allocation2 + $0x180] sm:$0xff] 0.0
      %68 = vst [vmem:[#allocation2 + $0x188] sm:$0xff] 0.0
      %69 = vst [vmem:[#allocation2 + $0x190] sm:$0xff] 0.0
      %70 = vst [vmem:[#allocation2 + $0x198] sm:$0xff] 0.0
      %71 = vst [vmem:[#allocation2 + $0x1a0] sm:$0xff] 0.0
      %72 = vst [vmem:[#allocation2 + $0x1a8] sm:$0xff] 0.0
      %73 = vst [vmem:[#allocation2 + $0x1b0] sm:$0xff] 0.0
      %74 = vst [vmem:[#allocation2 + $0x1b8] sm:$0xff] 0.0
      %75 = vst [vmem:[#allocation2 + $0x1c0] sm:$0xff] 0.0
      %76 = vst [vmem:[#allocation2 + $0x1c8] sm:$0xff] 0.0
      %77 = vst [vmem:[#allocation2 + $0x1d0] sm:$0xff] 0.0
      %78 = vst [vmem:[#allocation2 + $0x1d8] sm:$0xff] 0.0
      %79 = vst [vmem:[#allocation2 + $0x1e0] sm:$0xff] 0.0
      %80 = vst [vmem:[#allocation2 + $0x1e8] sm:$0xff] 0.0
      %81 = vst [vmem:[#allocation2 + $0x1f0] sm:$0xff] 0.0
      %82 = vst [vmem:[#allocation2 + $0x1f8] sm:$0xff] 0.0
      %83 = vst [vmem:[#allocation2 + $0x200] sm:$0xff] 0.0
      %84 = vst [vmem:[#allocation2 + $0x208] sm:$0xff] 0.0
      %85 = vst [vmem:[#allocation2 + $0x210] sm:$0xff] 0.0
      %86 = vst [vmem:[#allocation2 + $0x218] sm:$0xff] 0.0
      %87 = vst [vmem:[#allocation2 + $0x220] sm:$0xff] 0.0
      %88 = vst [vmem:[#allocation2 + $0x228] sm:$0xff] 0.0
      %89 = vst [vmem:[#allocation2 + $0x230] sm:$0xff] 0.0
      %90 = vst [vmem:[#allocation2 + $0x238] sm:$0xff] 0.0
      %91 = vst [vmem:[#allocation2 + $0x240] sm:$0xff] 0.0
      %92 = vst [vmem:[#allocation2 + $0x248] sm:$0xff] 0.0
      %93 = vst [vmem:[#allocation2 + $0x250] sm:$0xff] 0.0
    $region17: #{tpu_custom_call.1} parent=1 // pred_fallthru
      _
    %v94 = vld [vmem:[#allocation2] sm:$0xff]
    %v95 = vld [vmem:[#allocation2 + $0x8] sm:$0xff]
    %v96 = vld [vmem:[#allocation2 + $0x10] sm:$0xff]
    %v97 = vld [vmem:[#allocation2 + $0x18] sm:$0xff]
    %v98 = vld [vmem:[#allocation2 + $0x20] sm:$0xff]
    %v99 = vld [vmem:[#allocation2 + $0x28] sm:$0xff]
    %v100 = vld [vmem:[#allocation2 + $0x30] sm:$0xff]
    %v101 = vld [vmem:[#allocation2 + $0x38] sm:$0xff]
    %v102 = vld [vmem:[#allocation2 + $0x40] sm:$0xff]
    %v103 = vld [vmem:[#allocation2 + $0x48] sm:$0xff]
    %v104 = vld [vmem:[#allocation2 + $0x50] sm:$0xff]
    %v105 = vld [vmem:[#allocation2 + $0x58] sm:$0xff]
    %v106 = vld [vmem:[#allocation2 + $0x60] sm:$0xff]
    %v107 = vld [vmem:[#allocation2 + $0x68] sm:$0xff]
    %v108 = vld [vmem:[#allocation2 + $0x70] sm:$0xff]
    %v109 = vld [vmem:[#allocation2 + $0x78] sm:$0xff]
    %v110 = vld [vmem:[#allocation2 + $0x80] sm:$0xff]
    %v111 = vld [vmem:[#allocation2 + $0x88] sm:$0xff]
    %v112 = vld [vmem:[#allocation2 + $0x90] sm:$0xff]
    %v113 = vld [vmem:[#allocation2 + $0x98] sm:$0xff]
    %v114 = vld [vmem:[#allocation2 + $0xa0] sm:$0xff]
    %v115 = vld [vmem:[#allocation2 + $0xa8] sm:$0xff]
    %v116 = vld [vmem:[#allocation2 + $0xb0] sm:$0xff]
    %v117 = vld [vmem:[#allocation2 + $0xb8] sm:$0xff]
    %v118 = vld [vmem:[#allocation2 + $0xc0] sm:$0xff]
    %v119 = vld [vmem:[#allocation2 + $0xc8] sm:$0xff]
    %v120 = vld [vmem:[#allocation2 + $0xd0] sm:$0xff]
    %v121 = vld [vmem:[#allocation2 + $0xd8] sm:$0xff]
    %v122 = vld [vmem:[#allocation2 + $0xe0] sm:$0xff]
    %v123 = vld [vmem:[#allocation2 + $0xe8] sm:$0xff]
    %v124 = vld [vmem:[#allocation2 + $0xf0] sm:$0xff]
    %v125 = vld [vmem:[#allocation2 + $0xf8] sm:$0xff]
    %v126 = vld [vmem:[#allocation2 + $0x100] sm:$0xff]
    %v127 = vld [vmem:[#allocation2 + $0x108] sm:$0xff]
    %v128 = vld [vmem:[#allocation2 + $0x110] sm:$0xff]
    %v129 = vld [vmem:[#allocation2 + $0x118] sm:$0xff]
    %v130 = vld [vmem:[#allocation2 + $0x120] sm:$0xff]
    %v131 = vld [vmem:[#allocation2 + $0x128] sm:$0xff]
    %v132 = vld [vmem:[#allocation2 + $0x130] sm:$0xff]
    %v133 = vld [vmem:[#allocation2 + $0x138] sm:$0xff]
    %v134 = vld [vmem:[#allocation2 + $0x140] sm:$0xff]
    %v135 = vld [vmem:[#allocation2 + $0x148] sm:$0xff]
    %v136 = vld [vmem:[#allocation2 + $0x150] sm:$0xff]
    %v137 = vld [vmem:[#allocation2 + $0x158] sm:$0xff]
    %v138 = vld [vmem:[#allocation2 + $0x160] sm:$0xff]
    %v139 = vld [vmem:[#allocation2 + $0x168] sm:$0xff]
    %v140 = vld [vmem:[#allocation2 + $0x170] sm:$0xff]
    %v141 = vld [vmem:[#allocation2 + $0x178] sm:$0xff]
    %v142 = vld [vmem:[#allocation2 + $0x180] sm:$0xff]
    %v143 = vld [vmem:[#allocation2 + $0x188] sm:$0xff]
    %v144 = vld [vmem:[#allocation2 + $0x190] sm:$0xff]
    %v145 = vld [vmem:[#allocation2 + $0x198] sm:$0xff]
    %v146 = vld [vmem:[#allocation2 + $0x1a0] sm:$0xff]
    %v147 = vld [vmem:[#allocation2 + $0x1a8] sm:$0xff]
    %v148 = vld [vmem:[#allocation2 + $0x1b0] sm:$0xff]
    %v149 = vld [vmem:[#allocation2 + $0x1b8] sm:$0xff]
    %v150 = vld [vmem:[#allocation2 + $0x1c0] sm:$0xff]
    %v151 = vld [vmem:[#allocation2 + $0x1c8] sm:$0xff]
    %v152 = vld [vmem:[#allocation2 + $0x1d0] sm:$0xff]
    %v153 = vld [vmem:[#allocation2 + $0x1d8] sm:$0xff]
    %v154 = vld [vmem:[#allocation2 + $0x1e0] sm:$0xff]
    %v155 = vld [vmem:[#allocation2 + $0x1e8] sm:$0xff]
    %v156 = vld [vmem:[#allocation2 + $0x1f0] sm:$0xff]
    %v157 = vld [vmem:[#allocation2 + $0x1f8] sm:$0xff]
    %v158 = vld [vmem:[#allocation2 + $0x200] sm:$0xff]
    %v159 = vld [vmem:[#allocation2 + $0x208] sm:$0xff]
    %v160 = vld [vmem:[#allocation2 + $0x210] sm:$0xff]
    %v161 = vld [vmem:[#allocation2 + $0x218] sm:$0xff]
    %v162 = vld [vmem:[#allocation2 + $0x220] sm:$0xff]
    %v163 = vld [vmem:[#allocation2 + $0x228] sm:$0xff]
    %v164 = vld [vmem:[#allocation2 + $0x230] sm:$0xff]
    %v165 = vld [vmem:[#allocation2 + $0x238] sm:$0xff]
    %v166 = vld [vmem:[#allocation2 + $0x240] sm:$0xff]
    %v167 = vld [vmem:[#allocation2 + $0x248] sm:$0xff]
    %v168 = vld [vmem:[#allocation2 + $0x250] sm:$0xff]
    %v169 = vld [vmem:[%s0] sm:$0xff]
    %v170 = vld [vmem:[%s0 + $0x8] sm:$0xff]
    %v171 = vld [vmem:[%s0 + $0x10] sm:$0xff]
    %v172 = vld [vmem:[%s0 + $0x18] sm:$0xff]
    %v173 = vld [vmem:[%s0 + $0x20] sm:$0xff]
    %v174 = vld [vmem:[%s0 + $0x28] sm:$0xff]
    %v175 = vld [vmem:[%s0 + $0x30] sm:$0xff]
    %v176 = vld [vmem:[%s0 + $0x38] sm:$0xff]
    %v177 = vld [vmem:[%s0 + $0x40] sm:$0xff]
    %v178 = vld [vmem:[%s0 + $0x48] sm:$0xff]
    %v179 = vld [vmem:[%s0 + $0x50] sm:$0xff]
    %v180 = vld [vmem:[%s0 + $0x58] sm:$0xff]
    %v181 = vld [vmem:[%s0 + $0x60] sm:$0xff]
    %v182 = vld [vmem:[%s0 + $0x68] sm:$0xff]
    %v183 = vld [vmem:[%s0 + $0x70] sm:$0xff]
    %v184 = vld [vmem:[%s0 + $0x78] sm:$0xff]
    %v185 = vld [vmem:[%s0 + $0x80] sm:$0xff]
    %v186 = vld [vmem:[%s0 + $0x88] sm:$0xff]
    %v187 = vld [vmem:[%s0 + $0x90] sm:$0xff]
    %v188 = vld [vmem:[%s0 + $0x98] sm:$0xff]
    %v189 = vld [vmem:[%s0 + $0xa0] sm:$0xff]
    %v190 = vld [vmem:[%s0 + $0xa8] sm:$0xff]
    %v191 = vld [vmem:[%s0 + $0xb0] sm:$0xff]
    %v192 = vld [vmem:[%s0 + $0xb8] sm:$0xff]
    %v193 = vld [vmem:[%s0 + $0xc0] sm:$0xff]
    %v194 = vld [vmem:[%s0 + $0xc8] sm:$0xff]
    %v195 = vld [vmem:[%s0 + $0xd0] sm:$0xff]
    %v196 = vld [vmem:[%s0 + $0xd8] sm:$0xff]
    %v197 = vld [vmem:[%s0 + $0xe0] sm:$0xff]
    %v198 = vld [vmem:[%s0 + $0xe8] sm:$0xff]
    %v199 = vld [vmem:[%s0 + $0xf0] sm:$0xff]
    %v200 = vld [vmem:[%s0 + $0xf8] sm:$0xff]
    %v201 = vld [vmem:[%s0 + $0x100] sm:$0xff]
    %v202 = vld [vmem:[%s0 + $0x108] sm:$0xff]
    %v203 = vld [vmem:[%s0 + $0x110] sm:$0xff]
    %v204 = vld [vmem:[%s0 + $0x118] sm:$0xff]
    %v205 = vld [vmem:[%s0 + $0x120] sm:$0xff]
    %v206 = vld [vmem:[%s0 + $0x128] sm:$0xff]
    %v207 = vld [vmem:[%s0 + $0x130] sm:$0xff]
    %v208 = vld [vmem:[%s0 + $0x138] sm:$0xff]
    %v209 = vld [vmem:[%s0 + $0x140] sm:$0xff]
    %v210 = vld [vmem:[%s0 + $0x148] sm:$0xff]
    %v211 = vld [vmem:[%s0 + $0x150] sm:$0xff]
    %v212 = vld [vmem:[%s0 + $0x158] sm:$0xff]
    %v213 = vld [vmem:[%s0 + $0x160] sm:$0xff]
    %v214 = vld [vmem:[%s0 + $0x168] sm:$0xff]
    %v215 = vld [vmem:[%s0 + $0x170] sm:$0xff]
    %v216 = vld [vmem:[%s0 + $0x178] sm:$0xff]
    %v217 = vld [vmem:[%s0 + $0x180] sm:$0xff]
    %v218 = vld [vmem:[%s0 + $0x188] sm:$0xff]
    %v219 = vld [vmem:[%s0 + $0x190] sm:$0xff]
    %v220 = vld [vmem:[%s0 + $0x198] sm:$0xff]
    %v221 = vld [vmem:[%s0 + $0x1a0] sm:$0xff]
    %v222 = vld [vmem:[%s0 + $0x1a8] sm:$0xff]
    %v223 = vld [vmem:[%s0 + $0x1b0] sm:$0xff]
    %v224 = vld [vmem:[%s0 + $0x1b8] sm:$0xff]
    %v225 = vld [vmem:[%s0 + $0x1c0] sm:$0xff]
    %v226 = vld [vmem:[%s0 + $0x1c8] sm:$0xff]
    %v227 = vld [vmem:[%s0 + $0x1d0] sm:$0xff]
    %v228 = vld [vmem:[%s0 + $0x1d8] sm:$0xff]
    %v229 = vld [vmem:[%s0 + $0x1e0] sm:$0xff]
    %v230 = vld [vmem:[%s0 + $0x1e8] sm:$0xff]
    %v231 = vld [vmem:[%s0 + $0x1f0] sm:$0xff]
    %v232 = vld [vmem:[%s0 + $0x1f8] sm:$0xff]
    %v233 = vld [vmem:[%s0 + $0x200] sm:$0xff]
    %v234 = vld [vmem:[%s0 + $0x208] sm:$0xff]
    %v235 = vld [vmem:[%s0 + $0x210] sm:$0xff]
    %v236 = vld [vmem:[%s0 + $0x218] sm:$0xff]
    %v237 = vld [vmem:[%s0 + $0x220] sm:$0xff]
    %v238 = vld [vmem:[%s0 + $0x228] sm:$0xff]
    %v239 = vld [vmem:[%s0 + $0x230] sm:$0xff]
    %v240 = vld [vmem:[%s0 + $0x238] sm:$0xff]
    %v241 = vld [vmem:[%s0 + $0x240] sm:$0xff]
    %v242 = vld [vmem:[%s0 + $0x248] sm:$0xff]
    %v243 = vld [vmem:[%s0 + $0x250] sm:$0xff]
    %v244 = vld [vmem:[%s1] sm:$0xff]
    %v245 = vld [vmem:[%s1 + $0x8] sm:$0xff]
    %vm246 = vcmask 130048
    %v248 = vsel %vm246, %v169, 0
    %v251 = vsel %vm246, %v170, 0
    %v254 = vsel %vm246, %v171, 0
    %v257 = vsel %vm246, %v172, 0
    %v260 = vsel %vm246, %v173, 0
    %v263 = vsel %vm246, %v174, 0
    %v266 = vsel %vm246, %v175, 0
    %v269 = vsel %vm246, %v176, 0
    %v272 = vsel %vm246, %v177, 0
    %v275 = vsel %vm246, %v178, 0
    %v278 = vsel %vm246, %v179, 0
    %v281 = vsel %vm246, %v180, 0
    %v284 = vsel %vm246, %v181, 0
    %v287 = vsel %vm246, %v182, 0
    %v290 = vsel %vm246, %v183, 0
    %v293 = vsel %vm246, %v184, 0
    %v296 = vsel %vm246, %v185, 0
    %v299 = vsel %vm246, %v186, 0
    %v302 = vsel %vm246, %v187, 0
    %v305 = vsel %vm246, %v188, 0
    %v308 = vsel %vm246, %v189, 0
    %v311 = vsel %vm246, %v190, 0
    %v314 = vsel %vm246, %v191, 0
    %v317 = vsel %vm246, %v192, 0
    %v320 = vsel %vm246, %v193, 0
    %v323 = vsel %vm246, %v194, 0
    %v326 = vsel %vm246, %v195, 0
    %v329 = vsel %vm246, %v196, 0
    %v332 = vsel %vm246, %v197, 0
    %v335 = vsel %vm246, %v198, 0
    %v338 = vsel %vm246, %v199, 0
    %v341 = vsel %vm246, %v200, 0
    %v344 = vsel %vm246, %v201, 0
    %v347 = vsel %vm246, %v202, 0
    %v350 = vsel %vm246, %v203, 0
    %v353 = vsel %vm246, %v204, 0
    %v356 = vsel %vm246, %v205, 0
    %v359 = vsel %vm246, %v206, 0
    %v362 = vsel %vm246, %v207, 0
    %v365 = vsel %vm246, %v208, 0
    %v368 = vsel %vm246, %v209, 0
    %v371 = vsel %vm246, %v210, 0
    %v374 = vsel %vm246, %v211, 0
    %v377 = vsel %vm246, %v212, 0
    %v380 = vsel %vm246, %v213, 0
    %v383 = vsel %vm246, %v214, 0
    %v386 = vsel %vm246, %v215, 0
    %v389 = vsel %vm246, %v216, 0
    %v392 = vsel %vm246, %v217, 0
    %v395 = vsel %vm246, %v218, 0
    %v398 = vsel %vm246, %v219, 0
    %v401 = vsel %vm246, %v220, 0
    %v404 = vsel %vm246, %v221, 0
    %v407 = vsel %vm246, %v222, 0
    %v410 = vsel %vm246, %v223, 0
    %v413 = vsel %vm246, %v224, 0
    %v416 = vsel %vm246, %v225, 0
    %v419 = vsel %vm246, %v226, 0
    %v422 = vsel %vm246, %v227, 0
    %v425 = vsel %vm246, %v228, 0
    %v428 = vsel %vm246, %v229, 0
    %v431 = vsel %vm246, %v230, 0
    %v434 = vsel %vm246, %v231, 0
    %v437 = vsel %vm246, %v232, 0
    %v440 = vsel %vm246, %v233, 0
    %v443 = vsel %vm246, %v234, 0
    %v446 = vsel %vm246, %v235, 0
    %v449 = vsel %vm246, %v236, 0
    %v452 = vsel %vm246, %v237, 0
    %v455 = vsel %vm246, %v238, 0
    %v458 = vsel %vm246, %v239, 0
    %v461 = vsel %vm246, %v240, 0
    %v464 = vsel %vm246, %v241, 0
    %v467 = vsel %vm246, %v242, 0
    %v470 = vsel %vm246, %v243, 0
    %472 = vmatprep.subr.mxu0 0.0
    %473 = vmatpush1.msra.mxu0 %v244
    %474 = vmatprep.subr.mxu0 0.0
    %475 = vmatpush1.msra.mxu0 %v245
    %476 = vmatprep.subr.mxu0 0.0
    %477 = vmatpush1.msra.mxu0 0.0
    %478 = vmatprep.subr.mxu0 0.0
    %479 = vmatpush1.msra.mxu0 0.0
    %480 = vmatprep.subr.mxu0 0.0
    %481 = vmatpush1.msra.mxu0 0.0
    %482 = vmatprep.subr.mxu0 0.0
    %483 = vmatpush1.msra.mxu0 0.0
    %484 = vmatprep.subr.mxu0 0.0
    %485 = vmatpush1.msra.mxu0 0.0
    %486 = vmatprep.subr.mxu0 0.0
    %487 = vmatpush1.msra.mxu0 0.0
    %488 = vmatprep.subr.mxu0 0.0
    %489 = vmatpush1.msra.mxu0 0.0
    %490 = vmatprep.subr.mxu0 0.0
    %491 = vmatpush1.msra.mxu0 0.0
    %492 = vmatprep.subr.mxu0 0.0
    %493 = vmatpush1.msra.mxu0 0.0
    %494 = vmatprep.subr.mxu0 0.0
    %495 = vmatpush1.msra.mxu0 0.0
    %496 = vmatprep.subr.mxu0 0.0
    %497 = vmatpush1.msra.mxu0 0.0
    %498 = vmatprep.subr.mxu0 0.0
    %499 = vmatpush1.msra.mxu0 0.0
    %500 = vmatprep.subr.mxu0 0.0
    %501 = vmatpush1.msra.mxu0 0.0
    %502 = vmatprep.subr.mxu0 0.0
    %503 = vmatpush1.msra.mxu0 0.0
    %504 = vmatprep.subr.mxu0 0.0
    %505 = vmatpush1.msra.mxu0 0.0
    %506 = vmatprep.subr.mxu0 0.0
    %507 = vmatpush1.msra.mxu0 0.0
    %508 = vmatprep.subr.mxu0 0.0
    %509 = vmatpush1.msra.mxu0 0.0
    %510 = vmatprep.subr.mxu0 0.0
    %511 = vmatpush1.msra.mxu0 0.0
    %512 = vmatprep.subr.mxu0 0.0
    %513 = vmatpush1.msra.mxu0 0.0
    %514 = vmatprep.subr.mxu0 0.0
    %515 = vmatpush1.msra.mxu0 0.0
    %516 = vmatprep.subr.mxu0 0.0
    %517 = vmatpush1.msra.mxu0 0.0
    %518 = vmatprep.subr.mxu0 0.0
    %519 = vmatpush1.msra.mxu0 0.0
    %520 = vmatprep.subr.mxu0 0.0
    %521 = vmatpush1.msra.mxu0 0.0
    %522 = vmatprep.subr.mxu0 0.0
    %523 = vmatpush1.msra.mxu0 0.0
    %524 = vmatprep.subr.mxu0 0.0
    %525 = vmatpush1.msra.mxu0 0.0
    %526 = vmatprep.subr.mxu0 0.0
    %527 = vmatpush1.msra.mxu0 0.0
    %528 = vmatprep.subr.mxu0 0.0
    %529 = vmatpush1.msra.mxu0 0.0
    %530 = vmatprep.subr.mxu0 0.0
    %531 = vmatpush1.msra.mxu0 0.0
    %532 = vmatprep.subr.mxu0 0.0
    %533 = vmatpush1.msra.mxu0 0.0
    %534 = vmatprep.subr.mxu0 0.0
    %535 = vmatpush1.msra.mxu0 0.0
    %536 = vmatprep.mubr.f32.mxu0 0.0
    %537 = vmatmul.mubr.f32.gmra.mrb[0].mxu0 %v248
    %v538 = vpop.f32.mrb[0].mxu0
    %v539 = vadd.f32 0.0, %v538
    %v540 = vpop.f32.mrb[0].mxu0
    %541 = vmatprep.mubr.f32.mxu0 0.0
    %542 = vmatmul.mubr.f32.gmra.mrb[0].mxu0 %v251
    %v543 = vpop.f32.mrb[0].mxu0
    %v544 = vadd.f32 0.0, %v543
    %v545 = vpop.f32.mrb[0].mxu0
    %546 = vmatprep.mubr.f32.mxu0 0.0
    %547 = vmatmul.mubr.f32.gmra.mrb[0].mxu0 %v254
    %v548 = vpop.f32.mrb[0].mxu0
    %v549 = vadd.f32 0.0, %v548
    %v550 = vpop.f32.mrb[0].mxu0
    %551 = vmatprep.mubr.f32.mxu0 0.0
    %552 = vmatmul.mubr.f32.gmra.mrb[0].mxu0 %v257
    %v553 = vpop.f32.mrb[0].mxu0
    %v554 = vadd.f32 0.0, %v553
    %v555 = vpop.f32.mrb[0].mxu0
    %556 = vmatprep.mubr.f32.mxu0 0.0
    %557 = vmatmul.mubr.f32.gmra.mrb[0].mxu0 %v260
    %v558 = vpop.f32.mrb[0].mxu0
    %v559 = vadd.f32 0.0, %v558
    %v560 = vpop.f32.mrb[0].mxu0
    %561 = vmatprep.mubr.f32.mxu0 0.0
    %562 = vmatmul.mubr.f32.gmra.mrb[0].mxu0 %v263
    %v563 = vpop.f32.mrb[0].mxu0
    %v564 = vadd.f32 0.0, %v563
    %v565 = vpop.f32.mrb[0].mxu0
    %566 = vmatprep.mubr.f32.mxu0 0.0
    %567 = vmatmul.mubr.f32.gmra.mrb[0].mxu0 %v266
    %v568 = vpop.f32.mrb[0].mxu0
    %v569 = vadd.f32 0.0, %v568
    %v570 = vpop.f32.mrb[0].mxu0
    %571 = vmatprep.mubr.f32.mxu0 0.0
    %572 = vmatmul.mubr.f32.gmra.mrb[0].mxu0 %v269
    %v573 = vpop.f32.mrb[0].mxu0
    %v574 = vadd.f32 0.0, %v573
    %v575 = vpop.f32.mrb[0].mxu0
    %576 = vmatprep.mubr.f32.mxu0 0.0
    %577 = vmatmul.mubr.f32.gmra.mrb[0].mxu0 %v272
    %v578 = vpop.f32.mrb[0].mxu0
    %v579 = vadd.f32 0.0, %v578
    %v580 = vpop.f32.mrb[0].mxu0
    %581 = vmatprep.mubr.f32.mxu0 0.0
    %582 = vmatmul.mubr.f32.gmra.mrb[0].mxu0 %v275
    %v583 = vpop.f32.mrb[0].mxu0
    %v584 = vadd.f32 0.0, %v583
    %v585 = vpop.f32.mrb[0].mxu0
    %586 = vmatprep.mubr.f32.mxu0 0.0
    %587 = vmatmul.mubr.f32.gmra.mrb[0].mxu0 %v278
    %v588 = vpop.f32.mrb[0].mxu0
    %v589 = vadd.f32 0.0, %v588
    %v590 = vpop.f32.mrb[0].mxu0
    %591 = vmatprep.mubr.f32.mxu0 0.0
    %592 = vmatmul.mubr.f32.gmra.mrb[0].mxu0 %v281
    %v593 = vpop.f32.mrb[0].mxu0
    %v594 = vadd.f32 0.0, %v593
    %v595 = vpop.f32.mrb[0].mxu0
    %596 = vmatprep.mubr.f32.mxu0 0.0
    %597 = vmatmul.mubr.f32.gmra.mrb[0].mxu0 %v284
    %v598 = vpop.f32.mrb[0].mxu0
    %v599 = vadd.f32 0.0, %v598
    %v600 = vpop.f32.mrb[0].mxu0
    %601 = vmatprep.mubr.f32.mxu0 0.0
    %602 = vmatmul.mubr.f32.gmra.mrb[0].mxu0 %v287
    %v603 = vpop.f32.mrb[0].mxu0
    %v604 = vadd.f32 0.0, %v603
    %v605 = vpop.f32.mrb[0].mxu0
    %606 = vmatprep.mubr.f32.mxu0 0.0
    %607 = vmatmul.mubr.f32.gmra.mrb[0].mxu0 %v290
    %v608 = vpop.f32.mrb[0].mxu0
    %v609 = vadd.f32 0.0, %v608
    %v610 = vpop.f32.mrb[0].mxu0
    %611 = vmatprep.mubr.f32.mxu0 0.0
    %612 = vmatmul.mubr.f32.gmra.mrb[0].mxu0 %v293
    %v613 = vpop.f32.mrb[0].mxu0
    %v614 = vadd.f32 0.0, %v613
    %v615 = vpop.f32.mrb[0].mxu0
    %616 = vmatprep.mubr.f32.mxu0 0.0
    %617 = vmatmul.mubr.f32.gmra.mrb[0].mxu0 %v296
    %v618 = vpop.f32.mrb[0].mxu0
    %v619 = vadd.f32 0.0, %v618
    %v620 = vpop.f32.mrb[0].mxu0
    %621 = vmatprep.mubr.f32.mxu0 0.0
    %622 = vmatmul.mubr.f32.gmra.mrb[0].mxu0 %v299
    %v623 = vpop.f32.mrb[0].mxu0
    %v624 = vadd.f32 0.0, %v623
    %v625 = vpop.f32.mrb[0].mxu0
    %626 = vmatprep.mubr.f32.mxu0 0.0
    %627 = vmatmul.mubr.f32.gmra.mrb[0].mxu0 %v302
    %v628 = vpop.f32.mrb[0].mxu0
    %v629 = vadd.f32 0.0, %v628
    %v630 = vpop.f32.mrb[0].mxu0
    %631 = vmatprep.mubr.f32.mxu0 0.0
    %632 = vmatmul.mubr.f32.gmra.mrb[0].mxu0 %v305
    %v633 = vpop.f32.mrb[0].mxu0
    %v634 = vadd.f32 0.0, %v633
    %v635 = vpop.f32.mrb[0].mxu0
    %636 = vmatprep.mubr.f32.mxu0 0.0
    %637 = vmatmul.mubr.f32.gmra.mrb[0].mxu0 %v308
    %v638 = vpop.f32.mrb[0].mxu0
    %v639 = vadd.f32 0.0, %v638
    %v640 = vpop.f32.mrb[0].mxu0
    %641 = vmatprep.mubr.f32.mxu0 0.0
    %642 = vmatmul.mubr.f32.gmra.mrb[0].mxu0 %v311
    %v643 = vpop.f32.mrb[0].mxu0
    %v644 = vadd.f32 0.0, %v643
    %v645 = vpop.f32.mrb[0].mxu0
    %646 = vmatprep.mubr.f32.mxu0 0.0
    %647 = vmatmul.mubr.f32.gmra.mrb[0].mxu0 %v314
    %v648 = vpop.f32.mrb[0].mxu0
    %v649 = vadd.f32 0.0, %v648
    %v650 = vpop.f32.mrb[0].mxu0
    %651 = vmatprep.mubr.f32.mxu0 0.0
    %652 = vmatmul.mubr.f32.gmra.mrb[0].mxu0 %v317
    %v653 = vpop.f32.mrb[0].mxu0
    %v654 = vadd.f32 0.0, %v653
    %v655 = vpop.f32.mrb[0].mxu0
    %656 = vmatprep.mubr.f32.mxu0 0.0
    %657 = vmatmul.mubr.f32.gmra.mrb[0].mxu0 %v320
    %v658 = vpop.f32.mrb[0].mxu0
    %v659 = vadd.f32 0.0, %v658
    %v660 = vpop.f32.mrb[0].mxu0
    %661 = vmatprep.mubr.f32.mxu0 0.0
    %662 = vmatmul.mubr.f32.gmra.mrb[0].mxu0 %v323
    %v663 = vpop.f32.mrb[0].mxu0
    %v664 = vadd.f32 0.0, %v663
    %v665 = vpop.f32.mrb[0].mxu0
    %666 = vmatprep.mubr.f32.mxu0 0.0
    %667 = vmatmul.mubr.f32.gmra.mrb[0].mxu0 %v326
    %v668 = vpop.f32.mrb[0].mxu0
    %v669 = vadd.f32 0.0, %v668
    %v670 = vpop.f32.mrb[0].mxu0
    %671 = vmatprep.mubr.f32.mxu0 0.0
    %672 = vmatmul.mubr.f32.gmra.mrb[0].mxu0 %v329
    %v673 = vpop.f32.mrb[0].mxu0
    %v674 = vadd.f32 0.0, %v673
    %v675 = vpop.f32.mrb[0].mxu0
    %676 = vmatprep.mubr.f32.mxu0 0.0
    %677 = vmatmul.mubr.f32.gmra.mrb[0].mxu0 %v332
    %v678 = vpop.f32.mrb[0].mxu0
    %v679 = vadd.f32 0.0, %v678
    %v680 = vpop.f32.mrb[0].mxu0
    %681 = vmatprep.mubr.f32.mxu0 0.0
    %682 = vmatmul.mubr.f32.gmra.mrb[0].mxu0 %v335
    %v683 = vpop.f32.mrb[0].mxu0
    %v684 = vadd.f32 0.0, %v683
    %v685 = vpop.f32.mrb[0].mxu0
    %686 = vmatprep.mubr.f32.mxu0 0.0
    %687 = vmatmul.mubr.f32.gmra.mrb[0].mxu0 %v338
    %v688 = vpop.f32.mrb[0].mxu0
    %v689 = vadd.f32 0.0, %v688
    %v690 = vpop.f32.mrb[0].mxu0
    %691 = vmatprep.mubr.f32.mxu0 0.0
    %692 = vmatmul.mubr.f32.gmra.mrb[0].mxu0 %v341
    %v693 = vpop.f32.mrb[0].mxu0
    %v694 = vadd.f32 0.0, %v693
    %v695 = vpop.f32.mrb[0].mxu0
    %696 = vmatprep.mubr.f32.mxu0 0.0
    %697 = vmatmul.mubr.f32.gmra.mrb[0].mxu0 %v344
    %v698 = vpop.f32.mrb[0].mxu0
    %v699 = vadd.f32 0.0, %v698
    %v700 = vpop.f32.mrb[0].mxu0
    %701 = vmatprep.mubr.f32.mxu0 0.0
    %702 = vmatmul.mubr.f32.gmra.mrb[0].mxu0 %v347
    %v703 = vpop.f32.mrb[0].mxu0
    %v704 = vadd.f32 0.0, %v703
    %v705 = vpop.f32.mrb[0].mxu0
    %706 = vmatprep.mubr.f32.mxu0 0.0
    %707 = vmatmul.mubr.f32.gmra.mrb[0].mxu0 %v350
    %v708 = vpop.f32.mrb[0].mxu0
    %v709 = vadd.f32 0.0, %v708
    %v710 = vpop.f32.mrb[0].mxu0
    %711 = vmatprep.mubr.f32.mxu0 0.0
    %712 = vmatmul.mubr.f32.gmra.mrb[0].mxu0 %v353
    %v713 = vpop.f32.mrb[0].mxu0
    %v714 = vadd.f32 0.0, %v713
    %v715 = vpop.f32.mrb[0].mxu0
    %716 = vmatprep.mubr.f32.mxu0 0.0
    %717 = vmatmul.mubr.f32.gmra.mrb[0].mxu0 %v356
    %v718 = vpop.f32.mrb[0].mxu0
    %v719 = vadd.f32 0.0, %v718
    %v720 = vpop.f32.mrb[0].mxu0
    %721 = vmatprep.mubr.f32.mxu0 0.0
    %722 = vmatmul.mubr.f32.gmra.mrb[0].mxu0 %v359
    %v723 = vpop.f32.mrb[0].mxu0
    %v724 = vadd.f32 0.0, %v723
    %v725 = vpop.f32.mrb[0].mxu0
    %726 = vmatprep.mubr.f32.mxu0 0.0
    %727 = vmatmul.mubr.f32.gmra.mrb[0].mxu0 %v362
    %v728 = vpop.f32.mrb[0].mxu0
    %v729 = vadd.f32 0.0, %v728
    %v730 = vpop.f32.mrb[0].mxu0
    %731 = vmatprep.mubr.f32.mxu0 0.0
    %732 = vmatmul.mubr.f32.gmra.mrb[0].mxu0 %v365
    %v733 = vpop.f32.mrb[0].mxu0
    %v734 = vadd.f32 0.0, %v733
    %v735 = vpop.f32.mrb[0].mxu0
    %736 = vmatprep.mubr.f32.mxu0 0.0
    %737 = vmatmul.mubr.f32.gmra.mrb[0].mxu0 %v368
    %v738 = vpop.f32.mrb[0].mxu0
    %v739 = vadd.f32 0.0, %v738
    %v740 = vpop.f32.mrb[0].mxu0
    %741 = vmatprep.mubr.f32.mxu0 0.0
    %742 = vmatmul.mubr.f32.gmra.mrb[0].mxu0 %v371
    %v743 = vpop.f32.mrb[0].mxu0
    %v744 = vadd.f32 0.0, %v743
    %v745 = vpop.f32.mrb[0].mxu0
    %746 = vmatprep.mubr.f32.mxu0 0.0
    %747 = vmatmul.mubr.f32.gmra.mrb[0].mxu0 %v374
    %v748 = vpop.f32.mrb[0].mxu0
    %v749 = vadd.f32 0.0, %v748
    %v750 = vpop.f32.mrb[0].mxu0
    %751 = vmatprep.mubr.f32.mxu0 0.0
    %752 = vmatmul.mubr.f32.gmra.mrb[0].mxu0 %v377
    %v753 = vpop.f32.mrb[0].mxu0
    %v754 = vadd.f32 0.0, %v753
    %v755 = vpop.f32.mrb[0].mxu0
    %756 = vmatprep.mubr.f32.mxu0 0.0
    %757 = vmatmul.mubr.f32.gmra.mrb[0].mxu0 %v380
    %v758 = vpop.f32.mrb[0].mxu0
    %v759 = vadd.f32 0.0, %v758
    %v760 = vpop.f32.mrb[0].mxu0
    %761 = vmatprep.mubr.f32.mxu0 0.0
    %762 = vmatmul.mubr.f32.gmra.mrb[0].mxu0 %v383
    %v763 = vpop.f32.mrb[0].mxu0
    %v764 = vadd.f32 0.0, %v763
    %v765 = vpop.f32.mrb[0].mxu0
    %766 = vmatprep.mubr.f32.mxu0 0.0
    %767 = vmatmul.mubr.f32.gmra.mrb[0].mxu0 %v386
    %v768 = vpop.f32.mrb[0].mxu0
    %v769 = vadd.f32 0.0, %v768
    %v770 = vpop.f32.mrb[0].mxu0
    %771 = vmatprep.mubr.f32.mxu0 0.0
    %772 = vmatmul.mubr.f32.gmra.mrb[0].mxu0 %v389
    %v773 = vpop.f32.mrb[0].mxu0
    %v774 = vadd.f32 0.0, %v773
    %v775 = vpop.f32.mrb[0].mxu0
    %776 = vmatprep.mubr.f32.mxu0 0.0
    %777 = vmatmul.mubr.f32.gmra.mrb[0].mxu0 %v392
    %v778 = vpop.f32.mrb[0].mxu0
    %v779 = vadd.f32 0.0, %v778
    %v780 = vpop.f32.mrb[0].mxu0
    %781 = vmatprep.mubr.f32.mxu0 0.0
    %782 = vmatmul.mubr.f32.gmra.mrb[0].mxu0 %v395
    %v783 = vpop.f32.mrb[0].mxu0
    %v784 = vadd.f32 0.0, %v783
    %v785 = vpop.f32.mrb[0].mxu0
    %786 = vmatprep.mubr.f32.mxu0 0.0
    %787 = vmatmul.mubr.f32.gmra.mrb[0].mxu0 %v398
    %v788 = vpop.f32.mrb[0].mxu0
    %v789 = vadd.f32 0.0, %v788
    %v790 = vpop.f32.mrb[0].mxu0
    %791 = vmatprep.mubr.f32.mxu0 0.0
    %792 = vmatmul.mubr.f32.gmra.mrb[0].mxu0 %v401
    %v793 = vpop.f32.mrb[0].mxu0
    %v794 = vadd.f32 0.0, %v793
    %v795 = vpop.f32.mrb[0].mxu0
    %796 = vmatprep.mubr.f32.mxu0 0.0
    %797 = vmatmul.mubr.f32.gmra.mrb[0].mxu0 %v404
    %v798 = vpop.f32.mrb[0].mxu0
    %v799 = vadd.f32 0.0, %v798
    %v800 = vpop.f32.mrb[0].mxu0
    %801 = vmatprep.mubr.f32.mxu0 0.0
    %802 = vmatmul.mubr.f32.gmra.mrb[0].mxu0 %v407
    %v803 = vpop.f32.mrb[0].mxu0
    %v804 = vadd.f32 0.0, %v803
    %v805 = vpop.f32.mrb[0].mxu0
    %806 = vmatprep.mubr.f32.mxu0 0.0
    %807 = vmatmul.mubr.f32.gmra.mrb[0].mxu0 %v410
    %v808 = vpop.f32.mrb[0].mxu0
    %v809 = vadd.f32 0.0, %v808
    %v810 = vpop.f32.mrb[0].mxu0
    %811 = vmatprep.mubr.f32.mxu0 0.0
    %812 = vmatmul.mubr.f32.gmra.mrb[0].mxu0 %v413
    %v813 = vpop.f32.mrb[0].mxu0
    %v814 = vadd.f32 0.0, %v813
    %v815 = vpop.f32.mrb[0].mxu0
    %816 = vmatprep.mubr.f32.mxu0 0.0
    %817 = vmatmul.mubr.f32.gmra.mrb[0].mxu0 %v416
    %v818 = vpop.f32.mrb[0].mxu0
    %v819 = vadd.f32 0.0, %v818
    %v820 = vpop.f32.mrb[0].mxu0
    %821 = vmatprep.mubr.f32.mxu0 0.0
    %822 = vmatmul.mubr.f32.gmra.mrb[0].mxu0 %v419
    %v823 = vpop.f32.mrb[0].mxu0
    %v824 = vadd.f32 0.0, %v823
    %v825 = vpop.f32.mrb[0].mxu0
    %826 = vmatprep.mubr.f32.mxu0 0.0
    %827 = vmatmul.mubr.f32.gmra.mrb[0].mxu0 %v422
    %v828 = vpop.f32.mrb[0].mxu0
    %v829 = vadd.f32 0.0, %v828
    %v830 = vpop.f32.mrb[0].mxu0
    %831 = vmatprep.mubr.f32.mxu0 0.0
    %832 = vmatmul.mubr.f32.gmra.mrb[0].mxu0 %v425
    %v833 = vpop.f32.mrb[0].mxu0
    %v834 = vadd.f32 0.0, %v833
    %v835 = vpop.f32.mrb[0].mxu0
    %836 = vmatprep.mubr.f32.mxu0 0.0
    %837 = vmatmul.mubr.f32.gmra.mrb[0].mxu0 %v428
    %v838 = vpop.f32.mrb[0].mxu0
    %v839 = vadd.f32 0.0, %v838
    %v840 = vpop.f32.mrb[0].mxu0
    %841 = vmatprep.mubr.f32.mxu0 0.0
    %842 = vmatmul.mubr.f32.gmra.mrb[0].mxu0 %v431
    %v843 = vpop.f32.mrb[0].mxu0
    %v844 = vadd.f32 0.0, %v843
    %v845 = vpop.f32.mrb[0].mxu0
    %846 = vmatprep.mubr.f32.mxu0 0.0
    %847 = vmatmul.mubr.f32.gmra.mrb[0].mxu0 %v434
    %v848 = vpop.f32.mrb[0].mxu0
    %v849 = vadd.f32 0.0, %v848
    %v850 = vpop.f32.mrb[0].mxu0
    %851 = vmatprep.mubr.f32.mxu0 0.0
    %852 = vmatmul.mubr.f32.gmra.mrb[0].mxu0 %v437
    %v853 = vpop.f32.mrb[0].mxu0
    %v854 = vadd.f32 0.0, %v853
    %v855 = vpop.f32.mrb[0].mxu0
    %856 = vmatprep.mubr.f32.mxu0 0.0
    %857 = vmatmul.mubr.f32.gmra.mrb[0].mxu0 %v440
    %v858 = vpop.f32.mrb[0].mxu0
    %v859 = vadd.f32 0.0, %v858
    %v860 = vpop.f32.mrb[0].mxu0
    %861 = vmatprep.mubr.f32.mxu0 0.0
    %862 = vmatmul.mubr.f32.gmra.mrb[0].mxu0 %v443
    %v863 = vpop.f32.mrb[0].mxu0
    %v864 = vadd.f32 0.0, %v863
    %v865 = vpop.f32.mrb[0].mxu0
    %866 = vmatprep.mubr.f32.mxu0 0.0
    %867 = vmatmul.mubr.f32.gmra.mrb[0].mxu0 %v446
    %v868 = vpop.f32.mrb[0].mxu0
    %v869 = vadd.f32 0.0, %v868
    %v870 = vpop.f32.mrb[0].mxu0
    %871 = vmatprep.mubr.f32.mxu0 0.0
    %872 = vmatmul.mubr.f32.gmra.mrb[0].mxu0 %v449
    %v873 = vpop.f32.mrb[0].mxu0
    %v874 = vadd.f32 0.0, %v873
    %v875 = vpop.f32.mrb[0].mxu0
    %876 = vmatprep.mubr.f32.mxu0 0.0
    %877 = vmatmul.mubr.f32.gmra.mrb[0].mxu0 %v452
    %v878 = vpop.f32.mrb[0].mxu0
    %v879 = vadd.f32 0.0, %v878
    %v880 = vpop.f32.mrb[0].mxu0
    %881 = vmatprep.mubr.f32.mxu0 0.0
    %882 = vmatmul.mubr.f32.gmra.mrb[0].mxu0 %v455
    %v883 = vpop.f32.mrb[0].mxu0
    %v884 = vadd.f32 0.0, %v883
    %v885 = vpop.f32.mrb[0].mxu0
    %886 = vmatprep.mubr.f32.mxu0 0.0
    %887 = vmatmul.mubr.f32.gmra.mrb[0].mxu0 %v458
    %v888 = vpop.f32.mrb[0].mxu0
    %v889 = vadd.f32 0.0, %v888
    %v890 = vpop.f32.mrb[0].mxu0
    %891 = vmatprep.mubr.f32.mxu0 0.0
    %892 = vmatmul.mubr.f32.gmra.mrb[0].mxu0 %v461
    %v893 = vpop.f32.mrb[0].mxu0
    %v894 = vadd.f32 0.0, %v893
    %v895 = vpop.f32.mrb[0].mxu0
    %896 = vmatprep.mubr.f32.mxu0 0.0
    %897 = vmatmul.mubr.f32.gmra.mrb[0].mxu0 %v464
    %v898 = vpop.f32.mrb[0].mxu0
    %v899 = vadd.f32 0.0, %v898
    %v900 = vpop.f32.mrb[0].mxu0
    %901 = vmatprep.mubr.f32.mxu0 0.0
    %902 = vmatmul.mubr.f32.gmra.mrb[0].mxu0 %v467
    %v903 = vpop.f32.mrb[0].mxu0
    %v904 = vadd.f32 0.0, %v903
    %v905 = vpop.f32.mrb[0].mxu0
    %906 = vmatprep.mubr.f32.mxu0 0.0
    %907 = vmatmul.mubr.f32.gmra.mrb[0].mxu0 %v470
    %v908 = vpop.f32.mrb[0].mxu0
    %v909 = vadd.f32 0.0, %v908
    %v910 = vpop.f32.mrb[0].mxu0
    %911 = vdwg.mxu0
    %v912 = vadd.f32 %v94, %v539
    %v913 = vadd.f32 %v95, %v544
    %v914 = vadd.f32 %v96, %v549
    %v915 = vadd.f32 %v97, %v554
    %v916 = vadd.f32 %v98, %v559
    %v917 = vadd.f32 %v99, %v564
    %v918 = vadd.f32 %v100, %v569
    %v919 = vadd.f32 %v101, %v574
    %v920 = vadd.f32 %v102, %v579
    %v921 = vadd.f32 %v103, %v584
    %v922 = vadd.f32 %v104, %v589
    %v923 = vadd.f32 %v105, %v594
    %v924 = vadd.f32 %v106, %v599
    %v925 = vadd.f32 %v107, %v604
    %v926 = vadd.f32 %v108, %v609
    %v927 = vadd.f32 %v109, %v614
    %v928 = vadd.f32 %v110, %v619
    %v929 = vadd.f32 %v111, %v624
    %v930 = vadd.f32 %v112, %v629
    %v931 = vadd.f32 %v113, %v634
    %v932 = vadd.f32 %v114, %v639
    %v933 = vadd.f32 %v115, %v644
    %v934 = vadd.f32 %v116, %v649
    %v935 = vadd.f32 %v117, %v654
    %v936 = vadd.f32 %v118, %v659
    %v937 = vadd.f32 %v119, %v664
    %v938 = vadd.f32 %v120, %v669
    %v939 = vadd.f32 %v121, %v674
    %v940 = vadd.f32 %v122, %v679
    %v941 = vadd.f32 %v123, %v684
    %v942 = vadd.f32 %v124, %v689
    %v943 = vadd.f32 %v125, %v694
    %v944 = vadd.f32 %v126, %v699
    %v945 = vadd.f32 %v127, %v704
    %v946 = vadd.f32 %v128, %v709
    %v947 = vadd.f32 %v129, %v714
    %v948 = vadd.f32 %v130, %v719
    %v949 = vadd.f32 %v131, %v724
    %v950 = vadd.f32 %v132, %v729
    %v951 = vadd.f32 %v133, %v734
    %v952 = vadd.f32 %v134, %v739
    %v953 = vadd.f32 %v135, %v744
    %v954 = vadd.f32 %v136, %v749
    %v955 = vadd.f32 %v137, %v754
    %v956 = vadd.f32 %v138, %v759
    %v957 = vadd.f32 %v139, %v764
    %v958 = vadd.f32 %v140, %v769
    %v959 = vadd.f32 %v141, %v774
    %v960 = vadd.f32 %v142, %v779
    %v961 = vadd.f32 %v143, %v784
    %v962 = vadd.f32 %v144, %v789
    %v963 = vadd.f32 %v145, %v794
    %v964 = vadd.f32 %v146, %v799
    %v965 = vadd.f32 %v147, %v804
    %v966 = vadd.f32 %v148, %v809
    %v967 = vadd.f32 %v149, %v814
    %v968 = vadd.f32 %v150, %v819
    %v969 = vadd.f32 %v151, %v824
    %v970 = vadd.f32 %v152, %v829
    %v971 = vadd.f32 %v153, %v834
    %v972 = vadd.f32 %v154, %v839
    %v973 = vadd.f32 %v155, %v844
    %v974 = vadd.f32 %v156, %v849
    %v975 = vadd.f32 %v157, %v854
    %v976 = vadd.f32 %v158, %v859
    %v977 = vadd.f32 %v159, %v864
    %v978 = vadd.f32 %v160, %v869
    %v979 = vadd.f32 %v161, %v874
    %v980 = vadd.f32 %v162, %v879
    %v981 = vadd.f32 %v163, %v884
    %v982 = vadd.f32 %v164, %v889
    %v983 = vadd.f32 %v165, %v894
    %v984 = vadd.f32 %v166, %v899
    %v985 = vadd.f32 %v167, %v904
    %v986 = vadd.f32 %v168, %v909
    %987 = vst [vmem:[#allocation2] sm:$0xff] %v912
    %988 = vst [vmem:[#allocation2 + $0x8] sm:$0xff] %v913
    %989 = vst [vmem:[#allocation2 + $0x10] sm:$0xff] %v914
    %990 = vst [vmem:[#allocation2 + $0x18] sm:$0xff] %v915
    %991 = vst [vmem:[#allocation2 + $0x20] sm:$0xff] %v916
    %992 = vst [vmem:[#allocation2 + $0x28] sm:$0xff] %v917
    %993 = vst [vmem:[#allocation2 + $0x30] sm:$0xff] %v918
    %994 = vst [vmem:[#allocation2 + $0x38] sm:$0xff] %v919
    %995 = vst [vmem:[#allocation2 + $0x40] sm:$0xff] %v920
    %996 = vst [vmem:[#allocation2 + $0x48] sm:$0xff] %v921
    %997 = vst [vmem:[#allocation2 + $0x50] sm:$0xff] %v922
    %998 = vst [vmem:[#allocation2 + $0x58] sm:$0xff] %v923
    %999 = vst [vmem:[#allocation2 + $0x60] sm:$0xff] %v924
    %1000 = vst [vmem:[#allocation2 + $0x68] sm:$0xff] %v925
    %1001 = vst [vmem:[#allocation2 + $0x70] sm:$0xff] %v926
    %1002 = vst [vmem:[#allocation2 + $0x78] sm:$0xff] %v927
    %1003 = vst [vmem:[#allocation2 + $0x80] sm:$0xff] %v928
    %1004 = vst [vmem:[#allocation2 + $0x88] sm:$0xff] %v929
    %1005 = vst [vmem:[#allocation2 + $0x90] sm:$0xff] %v930
    %1006 = vst [vmem:[#allocation2 + $0x98] sm:$0xff] %v931
    %1007 = vst [vmem:[#allocation2 + $0xa0] sm:$0xff] %v932
    %1008 = vst [vmem:[#allocation2 + $0xa8] sm:$0xff] %v933
    %1009 = vst [vmem:[#allocation2 + $0xb0] sm:$0xff] %v934
    %1010 = vst [vmem:[#allocation2 + $0xb8] sm:$0xff] %v935
    %1011 = vst [vmem:[#allocation2 + $0xc0] sm:$0xff] %v936
    %1012 = vst [vmem:[#allocation2 + $0xc8] sm:$0xff] %v937
    %1013 = vst [vmem:[#allocation2 + $0xd0] sm:$0xff] %v938
    %1014 = vst [vmem:[#allocation2 + $0xd8] sm:$0xff] %v939
    %1015 = vst [vmem:[#allocation2 + $0xe0] sm:$0xff] %v940
    %1016 = vst [vmem:[#allocation2 + $0xe8] sm:$0xff] %v941
    %1017 = vst [vmem:[#allocation2 + $0xf0] sm:$0xff] %v942
    %1018 = vst [vmem:[#allocation2 + $0xf8] sm:$0xff] %v943
    %1019 = vst [vmem:[#allocation2 + $0x100] sm:$0xff] %v944
    %1020 = vst [vmem:[#allocation2 + $0x108] sm:$0xff] %v945
    %1021 = vst [vmem:[#allocation2 + $0x110] sm:$0xff] %v946
    %1022 = vst [vmem:[#allocation2 + $0x118] sm:$0xff] %v947
    %1023 = vst [vmem:[#allocation2 + $0x120] sm:$0xff] %v948
    %1024 = vst [vmem:[#allocation2 + $0x128] sm:$0xff] %v949
    %1025 = vst [vmem:[#allocation2 + $0x130] sm:$0xff] %v950
    %1026 = vst [vmem:[#allocation2 + $0x138] sm:$0xff] %v951
    %1027 = vst [vmem:[#allocation2 + $0x140] sm:$0xff] %v952
    %1028 = vst [vmem:[#allocation2 + $0x148] sm:$0xff] %v953
    %1029 = vst [vmem:[#allocation2 + $0x150] sm:$0xff] %v954
    %1030 = vst [vmem:[#allocation2 + $0x158] sm:$0xff] %v955
    %1031 = vst [vmem:[#allocation2 + $0x160] sm:$0xff] %v956
    %1032 = vst [vmem:[#allocation2 + $0x168] sm:$0xff] %v957
    %1033 = vst [vmem:[#allocation2 + $0x170] sm:$0xff] %v958
    %1034 = vst [vmem:[#allocation2 + $0x178] sm:$0xff] %v959
    %1035 = vst [vmem:[#allocation2 + $0x180] sm:$0xff] %v960
    %1036 = vst [vmem:[#allocation2 + $0x188] sm:$0xff] %v961
    %1037 = vst [vmem:[#allocation2 + $0x190] sm:$0xff] %v962
    %1038 = vst [vmem:[#allocation2 + $0x198] sm:$0xff] %v963
    %1039 = vst [vmem:[#allocation2 + $0x1a0] sm:$0xff] %v964
    %1040 = vst [vmem:[#allocation2 + $0x1a8] sm:$0xff] %v965
    %1041 = vst [vmem:[#allocation2 + $0x1b0] sm:$0xff] %v966
    %1042 = vst [vmem:[#allocation2 + $0x1b8] sm:$0xff] %v967
    %1043 = vst [vmem:[#allocation2 + $0x1c0] sm:$0xff] %v968
    %1044 = vst [vmem:[#allocation2 + $0x1c8] sm:$0xff] %v969
    %1045 = vst [vmem:[#allocation2 + $0x1d0] sm:$0xff] %v970
    %1046 = vst [vmem:[#allocation2 + $0x1d8] sm:$0xff] %v971
    %1047 = vst [vmem:[#allocation2 + $0x1e0] sm:$0xff] %v972
    %1048 = vst [vmem:[#allocation2 + $0x1e8] sm:$0xff] %v973
    %1049 = vst [vmem:[#allocation2 + $0x1f0] sm:$0xff] %v974
    %1050 = vst [vmem:[#allocation2 + $0x1f8] sm:$0xff] %v975
    %1051 = vst [vmem:[#allocation2 + $0x200] sm:$0xff] %v976
    %1052 = vst [vmem:[#allocation2 + $0x208] sm:$0xff] %v977
    %1053 = vst [vmem:[#allocation2 + $0x210] sm:$0xff] %v978
    %1054 = vst [vmem:[#allocation2 + $0x218] sm:$0xff] %v979
    %1055 = vst [vmem:[#allocation2 + $0x220] sm:$0xff] %v980
    %1056 = vst [vmem:[#allocation2 + $0x228] sm:$0xff] %v981
    %1057 = vst [vmem:[#allocation2 + $0x230] sm:$0xff] %v982
    %1058 = vst [vmem:[#allocation2 + $0x238] sm:$0xff] %v983
    %1059 = vst [vmem:[#allocation2 + $0x240] sm:$0xff] %v984
    %1060 = vst [vmem:[#allocation2 + $0x248] sm:$0xff] %v985
    %1061 = vst [vmem:[#allocation2 + $0x250] sm:$0xff] %v986
    // Predicated region
    $region18: #{tpu_custom_call.1} parent=1 // pred_check
      %p1062 = pneg %p15
    $region19: #{tpu_custom_call.1} parent=1 // pred_check_branch
      %1064 = sbr.rel (%p1062) target = $region21
    $region20: #{tpu_custom_call.1} parent=1 // pred_region
      %v1065 = vld [vmem:[#allocation2] sm:$0xff]
      %v1066 = vld [vmem:[#allocation2 + $0x8] sm:$0xff]
      %v1067 = vld [vmem:[#allocation2 + $0x10] sm:$0xff]
      %v1068 = vld [vmem:[#allocation2 + $0x18] sm:$0xff]
      %v1069 = vld [vmem:[#allocation2 + $0x20] sm:$0xff]
      %v1070 = vld [vmem:[#allocation2 + $0x28] sm:$0xff]
      %v1071 = vld [vmem:[#allocation2 + $0x30] sm:$0xff]
      %v1072 = vld [vmem:[#allocation2 + $0x38] sm:$0xff]
      %v1073 = vld [vmem:[#allocation2 + $0x40] sm:$0xff]
      %v1074 = vld [vmem:[#allocation2 + $0x48] sm:$0xff]
      %v1075 = vld [vmem:[#allocation2 + $0x50] sm:$0xff]
      %v1076 = vld [vmem:[#allocation2 + $0x58] sm:$0xff]
      %v1077 = vld [vmem:[#allocation2 + $0x60] sm:$0xff]
      %v1078 = vld [vmem:[#allocation2 + $0x68] sm:$0xff]
      %v1079 = vld [vmem:[#allocation2 + $0x70] sm:$0xff]
      %v1080 = vld [vmem:[#allocation2 + $0x78] sm:$0xff]
      %v1081 = vld [vmem:[#allocation2 + $0x80] sm:$0xff]
      %v1082 = vld [vmem:[#allocation2 + $0x88] sm:$0xff]
      %v1083 = vld [vmem:[#allocation2 + $0x90] sm:$0xff]
      %v1084 = vld [vmem:[#allocation2 + $0x98] sm:$0xff]
      %v1085 = vld [vmem:[#allocation2 + $0xa0] sm:$0xff]
      %v1086 = vld [vmem:[#allocation2 + $0xa8] sm:$0xff]
      %v1087 = vld [vmem:[#allocation2 + $0xb0] sm:$0xff]
      %v1088 = vld [vmem:[#allocation2 + $0xb8] sm:$0xff]
      %v1089 = vld [vmem:[#allocation2 + $0xc0] sm:$0xff]
      %v1090 = vld [vmem:[#allocation2 + $0xc8] sm:$0xff]
      %v1091 = vld [vmem:[#allocation2 + $0xd0] sm:$0xff]
      %v1092 = vld [vmem:[#allocation2 + $0xd8] sm:$0xff]
      %v1093 = vld [vmem:[#allocation2 + $0xe0] sm:$0xff]
      %v1094 = vld [vmem:[#allocation2 + $0xe8] sm:$0xff]
      %v1095 = vld [vmem:[#allocation2 + $0xf0] sm:$0xff]
      %v1096 = vld [vmem:[#allocation2 + $0xf8] sm:$0xff]
      %v1097 = vld [vmem:[#allocation2 + $0x100] sm:$0xff]
      %v1098 = vld [vmem:[#allocation2 + $0x108] sm:$0xff]
      %v1099 = vld [vmem:[#allocation2 + $0x110] sm:$0xff]
      %v1100 = vld [vmem:[#allocation2 + $0x118] sm:$0xff]
      %v1101 = vld [vmem:[#allocation2 + $0x120] sm:$0xff]
      %v1102 = vld [vmem:[#allocation2 + $0x128] sm:$0xff]
      %v1103 = vld [vmem:[#allocation2 + $0x130] sm:$0xff]
      %v1104 = vld [vmem:[#allocation2 + $0x138] sm:$0xff]
      %v1105 = vld [vmem:[#allocation2 + $0x140] sm:$0xff]
      %v1106 = vld [vmem:[#allocation2 + $0x148] sm:$0xff]
      %v1107 = vld [vmem:[#allocation2 + $0x150] sm:$0xff]
      %v1108 = vld [vmem:[#allocation2 + $0x158] sm:$0xff]
      %v1109 = vld [vmem:[#allocation2 + $0x160] sm:$0xff]
      %v1110 = vld [vmem:[#allocation2 + $0x168] sm:$0xff]
      %v1111 = vld [vmem:[#allocation2 + $0x170] sm:$0xff]
      %v1112 = vld [vmem:[#allocation2 + $0x178] sm:$0xff]
      %v1113 = vld [vmem:[#allocation2 + $0x180] sm:$0xff]
      %v1114 = vld [vmem:[#allocation2 + $0x188] sm:$0xff]
      %v1115 = vld [vmem:[#allocation2 + $0x190] sm:$0xff]
      %v1116 = vld [vmem:[#allocation2 + $0x198] sm:$0xff]
      %v1117 = vld [vmem:[#allocation2 + $0x1a0] sm:$0xff]
      %v1118 = vld [vmem:[#allocation2 + $0x1a8] sm:$0xff]
      %v1119 = vld [vmem:[#allocation2 + $0x1b0] sm:$0xff]
      %v1120 = vld [vmem:[#allocation2 + $0x1b8] sm:$0xff]
      %v1121 = vld [vmem:[#allocation2 + $0x1c0] sm:$0xff]
      %v1122 = vld [vmem:[#allocation2 + $0x1c8] sm:$0xff]
      %v1123 = vld [vmem:[#allocation2 + $0x1d0] sm:$0xff]
      %v1124 = vld [vmem:[#allocation2 + $0x1d8] sm:$0xff]
      %v1125 = vld [vmem:[#allocation2 + $0x1e0] sm:$0xff]
      %v1126 = vld [vmem:[#allocation2 + $0x1e8] sm:$0xff]
      %v1127 = vld [vmem:[#allocation2 + $0x1f0] sm:$0xff]
      %v1128 = vld [vmem:[#allocation2 + $0x1f8] sm:$0xff]
      %v1129 = vld [vmem:[#allocation2 + $0x200] sm:$0xff]
      %v1130 = vld [vmem:[#allocation2 + $0x208] sm:$0xff]
      %v1131 = vld [vmem:[#allocation2 + $0x210] sm:$0xff]
      %v1132 = vld [vmem:[#allocation2 + $0x218] sm:$0xff]
      %v1133 = vld [vmem:[#allocation2 + $0x220] sm:$0xff]
      %v1134 = vld [vmem:[#allocation2 + $0x228] sm:$0xff]
      %v1135 = vld [vmem:[#allocation2 + $0x230] sm:$0xff]
      %v1136 = vld [vmem:[#allocation2 + $0x238] sm:$0xff]
      %v1137 = vld [vmem:[#allocation2 + $0x240] sm:$0xff]
      %v1138 = vld [vmem:[#allocation2 + $0x248] sm:$0xff]
      %v1139 = vld [vmem:[#allocation2 + $0x250] sm:$0xff]
      %v1140 = vld [vmem:[%s2] sm:$0x1]
      %v1142 = vlaneseq
      %v1143 = vshrl.u32 %v1142, 7
      %v1144 = vsub.s32 0, %v1143
      %v1145 = vrot.slane %v1140, %v1144
      %v1147 = vsub.f32 %v1065, %v1145
      %v1148 = vsub.f32 %v1066, %v1145
      %v1149 = vsub.f32 %v1067, %v1145
      %v1150 = vsub.f32 %v1068, %v1145
      %v1151 = vsub.f32 %v1069, %v1145
      %v1152 = vsub.f32 %v1070, %v1145
      %v1153 = vsub.f32 %v1071, %v1145
      %v1154 = vsub.f32 %v1072, %v1145
      %v1155 = vsub.f32 %v1073, %v1145
      %v1156 = vsub.f32 %v1074, %v1145
      %v1157 = vsub.f32 %v1075, %v1145
      %v1158 = vsub.f32 %v1076, %v1145
      %v1159 = vsub.f32 %v1077, %v1145
      %v1160 = vsub.f32 %v1078, %v1145
      %v1161 = vsub.f32 %v1079, %v1145
      %v1162 = vsub.f32 %v1080, %v1145
      %v1163 = vsub.f32 %v1081, %v1145
      %v1164 = vsub.f32 %v1082, %v1145
      %v1165 = vsub.f32 %v1083, %v1145
      %v1166 = vsub.f32 %v1084, %v1145
      %v1167 = vsub.f32 %v1085, %v1145
      %v1168 = vsub.f32 %v1086, %v1145
      %v1169 = vsub.f32 %v1087, %v1145
      %v1170 = vsub.f32 %v1088, %v1145
      %v1171 = vsub.f32 %v1089, %v1145
      %v1172 = vsub.f32 %v1090, %v1145
      %v1173 = vsub.f32 %v1091, %v1145
      %v1174 = vsub.f32 %v1092, %v1145
      %v1175 = vsub.f32 %v1093, %v1145
      %v1176 = vsub.f32 %v1094, %v1145
      %v1177 = vsub.f32 %v1095, %v1145
      %v1178 = vsub.f32 %v1096, %v1145
      %v1179 = vsub.f32 %v1097, %v1145
      %v1180 = vsub.f32 %v1098, %v1145
      %v1181 = vsub.f32 %v1099, %v1145
      %v1182 = vsub.f32 %v1100, %v1145
      %v1183 = vsub.f32 %v1101, %v1145
      %v1184 = vsub.f32 %v1102, %v1145
      %v1185 = vsub.f32 %v1103, %v1145
      %v1186 = vsub.f32 %v1104, %v1145
      %v1187 = vsub.f32 %v1105, %v1145
      %v1188 = vsub.f32 %v1106, %v1145
      %v1189 = vsub.f32 %v1107, %v1145
      %v1190 = vsub.f32 %v1108, %v1145
      %v1191 = vsub.f32 %v1109, %v1145
      %v1192 = vsub.f32 %v1110, %v1145
      %v1193 = vsub.f32 %v1111, %v1145
      %v1194 = vsub.f32 %v1112, %v1145
      %v1195 = vsub.f32 %v1113, %v1145
      %v1196 = vsub.f32 %v1114, %v1145
      %v1197 = vsub.f32 %v1115, %v1145
      %v1198 = vsub.f32 %v1116, %v1145
      %v1199 = vsub.f32 %v1117, %v1145
      %v1200 = vsub.f32 %v1118, %v1145
      %v1201 = vsub.f32 %v1119, %v1145
      %v1202 = vsub.f32 %v1120, %v1145
      %v1203 = vsub.f32 %v1121, %v1145
      %v1204 = vsub.f32 %v1122, %v1145
      %v1205 = vsub.f32 %v1123, %v1145
      %v1206 = vsub.f32 %v1124, %v1145
      %v1207 = vsub.f32 %v1125, %v1145
      %v1208 = vsub.f32 %v1126, %v1145
      %v1209 = vsub.f32 %v1127, %v1145
      %v1210 = vsub.f32 %v1128, %v1145
      %v1211 = vsub.f32 %v1129, %v1145
      %v1212 = vsub.f32 %v1130, %v1145
      %v1213 = vsub.f32 %v1131, %v1145
      %v1214 = vsub.f32 %v1132, %v1145
      %v1215 = vsub.f32 %v1133, %v1145
      %v1216 = vsub.f32 %v1134, %v1145
      %v1217 = vsub.f32 %v1135, %v1145
      %v1218 = vsub.f32 %v1136, %v1145
      %v1219 = vsub.f32 %v1137, %v1145
      %v1220 = vsub.f32 %v1138, %v1145
      %v1221 = vsub.f32 %v1139, %v1145
      %v1222 = vmax.f32 %v1147, 0.0
      %v1223 = vmax.f32 %v1148, 0.0
      %v1224 = vmax.f32 %v1149, 0.0
      %v1225 = vmax.f32 %v1150, 0.0
      %v1226 = vmax.f32 %v1151, 0.0
      %v1227 = vmax.f32 %v1152, 0.0
      %v1228 = vmax.f32 %v1153, 0.0
      %v1229 = vmax.f32 %v1154, 0.0
      %v1230 = vmax.f32 %v1155, 0.0
      %v1231 = vmax.f32 %v1156, 0.0
      %v1232 = vmax.f32 %v1157, 0.0
      %v1233 = vmax.f32 %v1158, 0.0
      %v1234 = vmax.f32 %v1159, 0.0
      %v1235 = vmax.f32 %v1160, 0.0
      %v1236 = vmax.f32 %v1161, 0.0
      %v1237 = vmax.f32 %v1162, 0.0
      %v1238 = vmax.f32 %v1163, 0.0
      %v1239 = vmax.f32 %v1164, 0.0
      %v1240 = vmax.f32 %v1165, 0.0
      %v1241 = vmax.f32 %v1166, 0.0
      %v1242 = vmax.f32 %v1167, 0.0
      %v1243 = vmax.f32 %v1168, 0.0
      %v1244 = vmax.f32 %v1169, 0.0
      %v1245 = vmax.f32 %v1170, 0.0
      %v1246 = vmax.f32 %v1171, 0.0
      %v1247 = vmax.f32 %v1172, 0.0
      %v1248 = vmax.f32 %v1173, 0.0
      %v1249 = vmax.f32 %v1174, 0.0
      %v1250 = vmax.f32 %v1175, 0.0
      %v1251 = vmax.f32 %v1176, 0.0
      %v1252 = vmax.f32 %v1177, 0.0
      %v1253 = vmax.f32 %v1178, 0.0
      %v1254 = vmax.f32 %v1179, 0.0
      %v1255 = vmax.f32 %v1180, 0.0
      %v1256 = vmax.f32 %v1181, 0.0
      %v1257 = vmax.f32 %v1182, 0.0
      %v1258 = vmax.f32 %v1183, 0.0
      %v1259 = vmax.f32 %v1184, 0.0
      %v1260 = vmax.f32 %v1185, 0.0
      %v1261 = vmax.f32 %v1186, 0.0
      %v1262 = vmax.f32 %v1187, 0.0
      %v1263 = vmax.f32 %v1188, 0.0
      %v1264 = vmax.f32 %v1189, 0.0
      %v1265 = vmax.f32 %v1190, 0.0
      %v1266 = vmax.f32 %v1191, 0.0
      %v1267 = vmax.f32 %v1192, 0.0
      %v1268 = vmax.f32 %v1193, 0.0
      %v1269 = vmax.f32 %v1194, 0.0
      %v1270 = vmax.f32 %v1195, 0.0
      %v1271 = vmax.f32 %v1196, 0.0
      %v1272 = vmax.f32 %v1197, 0.0
      %v1273 = vmax.f32 %v1198, 0.0
      %v1274 = vmax.f32 %v1199, 0.0
      %v1275 = vmax.f32 %v1200, 0.0
      %v1276 = vmax.f32 %v1201, 0.0
      %v1277 = vmax.f32 %v1202, 0.0
      %v1278 = vmax.f32 %v1203, 0.0
      %v1279 = vmax.f32 %v1204, 0.0
      %v1280 = vmax.f32 %v1205, 0.0
      %v1281 = vmax.f32 %v1206, 0.0
      %v1282 = vmax.f32 %v1207, 0.0
      %v1283 = vmax.f32 %v1208, 0.0
      %v1284 = vmax.f32 %v1209, 0.0
      %v1285 = vmax.f32 %v1210, 0.0
      %v1286 = vmax.f32 %v1211, 0.0
      %v1287 = vmax.f32 %v1212, 0.0
      %v1288 = vmax.f32 %v1213, 0.0
      %v1289 = vmax.f32 %v1214, 0.0
      %v1290 = vmax.f32 %v1215, 0.0
      %v1291 = vmax.f32 %v1216, 0.0
      %v1292 = vmax.f32 %v1217, 0.0
      %v1293 = vmax.f32 %v1218, 0.0
      %v1294 = vmax.f32 %v1219, 0.0
      %v1295 = vmax.f32 %v1220, 0.0
      %v1296 = vmax.f32 %v1221, 0.0
      %1297 = vst [vmem:[#allocation3] sm:$0xff] %v1222
      %1298 = vst [vmem:[#allocation3 + $0x8] sm:$0xff] %v1223
      %1299 = vst [vmem:[#allocation3 + $0x10] sm:$0xff] %v1224
      %1300 = vst [vmem:[#allocation3 + $0x18] sm:$0xff] %v1225
      %1301 = vst [vmem:[#allocation3 + $0x20] sm:$0xff] %v1226
      %1302 = vst [vmem:[#allocation3 + $0x28] sm:$0xff] %v1227
      %1303 = vst [vmem:[#allocation3 + $0x30] sm:$0xff] %v1228
      %1304 = vst [vmem:[#allocation3 + $0x38] sm:$0xff] %v1229
      %1305 = vst [vmem:[#allocation3 + $0x40] sm:$0xff] %v1230
      %1306 = vst [vmem:[#allocation3 + $0x48] sm:$0xff] %v1231
      %1307 = vst [vmem:[#allocation3 + $0x50] sm:$0xff] %v1232
      %1308 = vst [vmem:[#allocation3 + $0x58] sm:$0xff] %v1233
      %1309 = vst [vmem:[#allocation3 + $0x60] sm:$0xff] %v1234
      %1310 = vst [vmem:[#allocation3 + $0x68] sm:$0xff] %v1235
      %1311 = vst [vmem:[#allocation3 + $0x70] sm:$0xff] %v1236
      %1312 = vst [vmem:[#allocation3 + $0x78] sm:$0xff] %v1237
      %1313 = vst [vmem:[#allocation3 + $0x80] sm:$0xff] %v1238
      %1314 = vst [vmem:[#allocation3 + $0x88] sm:$0xff] %v1239
      %1315 = vst [vmem:[#allocation3 + $0x90] sm:$0xff] %v1240
      %1316 = vst [vmem:[#allocation3 + $0x98] sm:$0xff] %v1241
      %1317 = vst [vmem:[#allocation3 + $0xa0] sm:$0xff] %v1242
      %1318 = vst [vmem:[#allocation3 + $0xa8] sm:$0xff] %v1243
      %1319 = vst [vmem:[#allocation3 + $0xb0] sm:$0xff] %v1244
      %1320 = vst [vmem:[#allocation3 + $0xb8] sm:$0xff] %v1245
      %1321 = vst [vmem:[#allocation3 + $0xc0] sm:$0xff] %v1246
      %1322 = vst [vmem:[#allocation3 + $0xc8] sm:$0xff] %v1247
      %1323 = vst [vmem:[#allocation3 + $0xd0] sm:$0xff] %v1248
      %1324 = vst [vmem:[#allocation3 + $0xd8] sm:$0xff] %v1249
      %1325 = vst [vmem:[#allocation3 + $0xe0] sm:$0xff] %v1250
      %1326 = vst [vmem:[#allocation3 + $0xe8] sm:$0xff] %v1251
      %1327 = vst [vmem:[#allocation3 + $0xf0] sm:$0xff] %v1252
      %1328 = vst [vmem:[#allocation3 + $0xf8] sm:$0xff] %v1253
      %1329 = vst [vmem:[#allocation3 + $0x100] sm:$0xff] %v1254
      %1330 = vst [vmem:[#allocation3 + $0x108] sm:$0xff] %v1255
      %1331 = vst [vmem:[#allocation3 + $0x110] sm:$0xff] %v1256
      %1332 = vst [vmem:[#allocation3 + $0x118] sm:$0xff] %v1257
      %1333 = vst [vmem:[#allocation3 + $0x120] sm:$0xff] %v1258
      %1334 = vst [vmem:[#allocation3 + $0x128] sm:$0xff] %v1259
      %1335 = vst [vmem:[#allocation3 + $0x130] sm:$0xff] %v1260
      %1336 = vst [vmem:[#allocation3 + $0x138] sm:$0xff] %v1261
      %1337 = vst [vmem:[#allocation3 + $0x140] sm:$0xff] %v1262
      %1338 = vst [vmem:[#allocation3 + $0x148] sm:$0xff] %v1263
      %1339 = vst [vmem:[#allocation3 + $0x150] sm:$0xff] %v1264
      %1340 = vst [vmem:[#allocation3 + $0x158] sm:$0xff] %v1265
      %1341 = vst [vmem:[#allocation3 + $0x160] sm:$0xff] %v1266
      %1342 = vst [vmem:[#allocation3 + $0x168] sm:$0xff] %v1267
      %1343 = vst [vmem:[#allocation3 + $0x170] sm:$0xff] %v1268
      %1344 = vst [vmem:[#allocation3 + $0x178] sm:$0xff] %v1269
      %1345 = vst [vmem:[#allocation3 + $0x180] sm:$0xff] %v1270
      %1346 = vst [vmem:[#allocation3 + $0x188] sm:$0xff] %v1271
      %1347 = vst [vmem:[#allocation3 + $0x190] sm:$0xff] %v1272
      %1348 = vst [vmem:[#allocation3 + $0x198] sm:$0xff] %v1273
      %1349 = vst [vmem:[#allocation3 + $0x1a0] sm:$0xff] %v1274
      %1350 = vst [vmem:[#allocation3 + $0x1a8] sm:$0xff] %v1275
      %1351 = vst [vmem:[#allocation3 + $0x1b0] sm:$0xff] %v1276
      %1352 = vst [vmem:[#allocation3 + $0x1b8] sm:$0xff] %v1277
      %1353 = vst [vmem:[#allocation3 + $0x1c0] sm:$0xff] %v1278
      %1354 = vst [vmem:[#allocation3 + $0x1c8] sm:$0xff] %v1279
      %1355 = vst [vmem:[#allocation3 + $0x1d0] sm:$0xff] %v1280
      %1356 = vst [vmem:[#allocation3 + $0x1d8] sm:$0xff] %v1281
      %1357 = vst [vmem:[#allocation3 + $0x1e0] sm:$0xff] %v1282
      %1358 = vst [vmem:[#allocation3 + $0x1e8] sm:$0xff] %v1283
      %1359 = vst [vmem:[#allocation3 + $0x1f0] sm:$0xff] %v1284
      %1360 = vst [vmem:[#allocation3 + $0x1f8] sm:$0xff] %v1285
      %1361 = vst [vmem:[#allocation3 + $0x200] sm:$0xff] %v1286
      %1362 = vst [vmem:[#allocation3 + $0x208] sm:$0xff] %v1287
      %1363 = vst [vmem:[#allocation3 + $0x210] sm:$0xff] %v1288
      %1364 = vst [vmem:[#allocation3 + $0x218] sm:$0xff] %v1289
      %1365 = vst [vmem:[#allocation3 + $0x220] sm:$0xff] %v1290
      %1366 = vst [vmem:[#allocation3 + $0x228] sm:$0xff] %v1291
      %1367 = vst [vmem:[#allocation3 + $0x230] sm:$0xff] %v1292
      %1368 = vst [vmem:[#allocation3 + $0x238] sm:$0xff] %v1293
      %1369 = vst [vmem:[#allocation3 + $0x240] sm:$0xff] %v1294
      %1370 = vst [vmem:[#allocation3 + $0x248] sm:$0xff] %v1295
      %1371 = vst [vmem:[#allocation3 + $0x250] sm:$0xff] %v1296
    $region21: #{tpu_custom_call.1} parent=1 // pred_fallthru
      _
    // Predicated region
    $region22: #{tpu_custom_call.1} parent=1 // pred_check
      _
    $region23: #{tpu_custom_call.1} parent=1 // pred_check_branch
      %1373 = sbr.rel (0) target = $region25
    $region24: #{tpu_custom_call.1} parent=1 // pred_region
      %s1375 = ssub.s32 9600, 9600
      %1376 = vsyncadd [#allocation4], %s1375
      %s1377 = sshll.u32 [#allocation3], 4
      %s1378 = int_to_ptr.vmem [resolvable:$true] %s1377
      %1383 = dma.vmem_to_hbm [thread:$0]  %s1378, 9600, %s3, [#allocation4], 128, 128, 8
    $region25: #{tpu_custom_call.1} parent=1 // pred_fallthru
      _
    // Predicated region
    $region26: #{tpu_custom_call.1} parent=1 // pred_check
      _
    $region27: #{tpu_custom_call.1} parent=1 // pred_check_branch
      %1385 = sbr.rel (0) target = $region29
    $region28: #{tpu_custom_call.1} parent=1 // pred_region
      %1386 = dma.done [#allocation4], 9600
    $region29: #{tpu_custom_call.1} parent=1 // pred_fallthru
      _
    %1387 = vsyncpa [#allocation4], 1

</llo_original>
